<compile_context>
chip_gen: v7x
topology: tpu7x:2x2x1
jax: 0.10.0
libtpu: 0.0.40
codegen_flags: <defaults>
</compile_context>

<pallas_src>
import functools

import jax
import jax.numpy as jnp
from jax.experimental import pallas as pl
from jax.experimental.pallas import tpu as pltpu


NINP = 3     # train_dataset.num_features (MNIST75 superpixels + degree feature)
NOUT = 64    # hidden width
NHID = 32    # fc1 width
NCLS = 10    # classes
BN_EPS = 1e-5

# Per-graph padding: MNIST75 graphs have <= 75 nodes -> pad each graph block to
# an MXU/lane friendly 128.  Padded node rows/cols of A and the pooling row are
# zero, so padded nodes never influence valid nodes or the graph output.
N_PAD = 128
# Layer-1 contraction dim padded to a sublane multiple.
F_PAD = 8


# --------------------------------------------------------------------------
# Fused Pallas kernel: one grid step == one graph (all 3 layers + head).
# --------------------------------------------------------------------------
def _gnn_fused_kernel(x_ref, a_ref, p_ref,
                      w1_ref, b1_ref, c1_ref,        # layer 1: cat weight/bias, conv bias
                      w2_ref, b2_ref, c2_ref,        # layer 2
                      w3_ref, b3_ref, c3_ref,        # layer 3
                      bn_scale_ref, bn_shift_ref,    # folded eval BatchNorm1d
                      fw1_ref, fb1_ref,              # fc1
                      fw2_ref, fb2_ref,              # fc2
                      o_ref):
    a = a_ref[0]          # (N_PAD, N_PAD) adjacency block of this graph
    h = x_ref[0]          # (N_PAD, F_PAD) node features of this graph

    def layer(h, w_ref, bcat_ref, bconv_ref):
        # One lane-dense 256-wide matmul for [ fc_a | Wc | fc_b1 | fc_b2 ].
        hc = jnp.dot(h, w_ref[...], preferred_element_type=jnp.float32) + bcat_ref[...]
        lin = hc[:, 0 * NOUT:1 * NOUT]
        xc = hc[:, 1 * NOUT:2 * NOUT]     # conv bias is added AFTER A @ xc
        g1 = hc[:, 2 * NOUT:3 * NOUT]
        g2 = hc[:, 3 * NOUT:4 * NOUT]
        conv = jnp.dot(a, xc, preferred_element_type=jnp.float32) + bconv_ref[...]
        return jnp.maximum(lin + conv + g1 * g2, 0.0)

    h = layer(h, w1_ref, b1_ref, c1_ref)
    h = layer(h, w2_ref, b2_ref, c2_ref)
    h = layer(h, w3_ref, b3_ref, c3_ref)

    # Head: masked mean-pool row (1/count on valid nodes, 0 on padding),
    # folded eval BatchNorm, fc1 + relu, fc2 + log_softmax.
    g = jnp.dot(p_ref[0], h, preferred_element_type=jnp.float32)          # (1, NOUT)
    g = g * bn_scale_ref[...] + bn_shift_ref[...]
    z1 = jnp.dot(g, fw1_ref[...], preferred_element_type=jnp.float32) + fb1_ref[...]
    z1 = jnp.maximum(z1, 0.0)
    z2 = jnp.dot(z1, fw2_ref[...], preferred_element_type=jnp.float32) + fb2_ref[...]
    m = jnp.max(z2, axis=1, keepdims=True)
    lse = m + jnp.log(jnp.sum(jnp.exp(z2 - m), axis=1, keepdims=True))
    o_ref[0] = z2 - lse


# --------------------------------------------------------------------------
# Parameter setup + weight preprocessing (glue in plain JAX)
# --------------------------------------------------------------------------
def init_params(key):
    def lin(key, fin, fout, scale=0.1):
        kw, kb = jax.random.split(key)
        w = scale * jax.random.normal(kw, (fin, fout), jnp.float32)
        b = scale * jax.random.normal(kb, (1, fout), jnp.float32)
        return w, b

    keys = jax.random.split(key, 16)
    p = {}
    # layer 1 (input dim NINP)
    p["fc11"] = lin(keys[0], NINP, NOUT)
    p["conv11"] = lin(keys[1], NINP, NOUT)
    p["fc12"] = lin(keys[2], NINP, NOUT)
    p["fc13"] = lin(keys[3], NINP, NOUT)
    # layer 2 / 3 (input dim NOUT, concat=False -> nin == nout)
    p["fc21"] = lin(keys[4], NOUT, NOUT)
    p["conv21"] = lin(keys[5], NOUT, NOUT)
    p["fc22"] = lin(keys[6], NOUT, NOUT)
    p["fc23"] = lin(keys[7], NOUT, NOUT)
    p["fc31"] = lin(keys[8], NOUT, NOUT)
    p["conv31"] = lin(keys[9], NOUT, NOUT)
    p["fc32"] = lin(keys[10], NOUT, NOUT)
    p["fc33"] = lin(keys[11], NOUT, NOUT)
    # BatchNorm1d(nin) -- PyTorch defaults (eval mode running stats)
    p["bn_gamma"] = jnp.ones((1, NOUT), jnp.float32)
    p["bn_beta"] = jnp.zeros((1, NOUT), jnp.float32)
    p["bn_mean"] = jnp.zeros((1, NOUT), jnp.float32)
    p["bn_var"] = jnp.ones((1, NOUT), jnp.float32)
    # head
    p["fc1"] = lin(keys[12], NOUT, NHID)
    p["fc2"] = lin(keys[13], NHID, NCLS)
    return p


def _prep_weights(params):
    """Concat the four per-layer projections into one [K, 4*NOUT] weight and
    fold eval-mode BatchNorm into a scale/shift pair."""
    def cat(fa, cv, fb1, fb2, k_in, k_pad):
        wa, ba = params[fa]
        wc, bc = params[cv]
        wb1, bb1 = params[fb1]
        wb2, bb2 = params[fb2]
        w = jnp.concatenate([wa, wc, wb1, wb2], axis=1)                   # [k_in, 256]
        w = jnp.pad(w, ((0, k_pad - k_in), (0, 0)))                       # pad K
        b = jnp.concatenate([ba, jnp.zeros_like(bc), bb1, bb2], axis=1)   # [1, 256]
        return w, b, bc

    w1, b1, c1 = cat("fc11", "conv11", "fc12", "fc13", NINP, F_PAD)
    w2, b2, c2 = cat("fc21", "conv21", "fc22", "fc23", NOUT, NOUT)
    w3, b3, c3 = cat("fc31", "conv31", "fc32", "fc33", NOUT, NOUT)

    scale = params["bn_gamma"] * jax.lax.rsqrt(params["bn_var"] + BN_EPS)
    shift = params["bn_beta"] - params["bn_mean"] * scale
    return (w1, b1, c1, w2, b2, c2, w3, b3, c3, scale, shift,
            params["fc1"][0], params["fc1"][1],
            params["fc2"][0], params["fc2"][1])


def build_graph_tensors(x, edge_index, batch, num_graphs):
    """Per-graph padded blocks (block-diagonal adjacency), plain-JAX glue.

    Assumes the PyG batching convention: nodes are grouped contiguously per
    graph and `batch` is sorted ascending.
    """
    n = x.shape[0]
    counts = jnp.zeros((num_graphs,), jnp.int32).at[batch].add(1)
    starts = jnp.cumsum(counts) - counts                       # exclusive cumsum
    pos = jnp.arange(n, dtype=jnp.int32) - starts[batch]       # node index inside graph

    xp = jnp.pad(x, ((0, 0), (0, F_PAD - x.shape[1])))
    x_pad = jnp.zeros((num_graphs, N_PAD, F_PAD), jnp.float32)
    x_pad = x_pad.at[batch, pos, :].set(xp)

    src, dst = edge_index[0], edge_index[1]
    # out[i] = sum_{j -> i} msg[j]  (PyG source_to_target, aggr='add', edge_attr == 1)
    a_pad = jnp.zeros((num_graphs, N_PAD, N_PAD), jnp.float32)
    a_pad = a_pad.at[batch[dst], pos[dst], pos[src]].add(1.0)

    # Mean-pool row: 1/count on valid nodes, 0 on padding (guard empty graphs).
    inv = jnp.where(counts > 0, 1.0 / jnp.maximum(counts, 1).astype(jnp.float32), 0.0)
    pool = jnp.zeros((num_graphs, 1, N_PAD), jnp.float32)
    pool = pool.at[batch, 0, pos].set(inv[batch])
    return x_pad, a_pad, pool


# --------------------------------------------------------------------------
# Full forward: single fused pallas_call, grid over graphs.
# --------------------------------------------------------------------------
@functools.partial(jax.jit, static_argnums=(4,))
def gnnml1_forward(params, x, edge_index, batch, num_graphs):
    x_pad, a_pad, pool = build_graph_tensors(x, edge_index, batch, num_graphs)
    weights = _prep_weights(params)
    inputs = (x_pad, a_pad, pool) + weights

    graph_specs = [
        pl.BlockSpec((1, N_PAD, F_PAD), lambda g: (g, 0, 0)),
        pl.BlockSpec((1, N_PAD, N_PAD), lambda g: (g, 0, 0)),
        pl.BlockSpec((1, 1, N_PAD), lambda g: (g, 0, 0)),
    ]
    # Constant index_map -> each weight is DMAed into VMEM once and stays
    # resident across all grid steps.
    weight_specs = [pl.BlockSpec(w.shape, lambda g: (0, 0)) for w in weights]

    flops_per_graph = (
        2 * N_PAD * F_PAD * 4 * NOUT            # layer-1 concat matmul
        + 2 * (2 * N_PAD * NOUT * 4 * NOUT)     # layer-2/3 concat matmuls
        + 3 * (2 * N_PAD * N_PAD * NOUT)        # A @ xc per layer
        + 2 * N_PAD * NOUT                      # pooling
        + 2 * NOUT * NHID + 2 * NHID * NCLS)    # head
    bytes_accessed = 4 * (sum(int(t.size) for t in inputs) + num_graphs * NCLS)

    out = pl.pallas_call(
        _gnn_fused_kernel,
        out_shape=jax.ShapeDtypeStruct((num_graphs, 1, NCLS), jnp.float32),
        grid=(num_graphs,),
        in_specs=graph_specs + weight_specs,
        out_specs=pl.BlockSpec((1, 1, NCLS), lambda g: (g, 0, 0)),
        compiler_params=pltpu.CompilerParams(
            dimension_semantics=("parallel",)),
        cost_estimate=pl.CostEstimate(
            flops=num_graphs * flops_per_graph,
            transcendentals=num_graphs * (NCLS + 1),
            bytes_accessed=bytes_accessed),
    )(*inputs)
    return out[:, 0, :]


# --------------------------------------------------------------------------
if __name__ == "__main__":
    key = jax.random.PRNGKey(0)
    k_param, k_x = jax.random.split(key)

    params = init_params(k_param)

    # Two small graphs, 8 nodes each (MNIST75 graphs have <= 75 nodes).
    nodes_per_graph = 8
    num_graphs = 2
    n_nodes = nodes_per_graph * num_graphs           # 16

    x = jax.random.normal(k_x, (n_nodes, NINP), jnp.float32)
    batch = jnp.repeat(jnp.arange(num_graphs, dtype=jnp.int32), nodes_per_graph)

    # Deterministic ring topology inside each graph (undirected: both directions).
    src_list, dst_list = [], []
    for g in range(num_graphs):
        base = g * nodes_per_graph
        for i in range(nodes_per_graph):
            j = (i + 1) % nodes_per_graph
            src_list += [base + i, base + j]
            dst_list += [base + j, base + i]
    edge_index = jnp.array([src_list, dst_list], dtype=jnp.int32)   # [2, E]

    out = gnnml1_forward(params, x, edge_index, batch, num_graphs)
    out = jax.block_until_ready(out)

    assert out.shape == (num_graphs, NCLS)
    # log_softmax rows must sum (in prob space) to 1.
    assert jnp.allclose(jnp.sum(jnp.exp(out), axis=1), 1.0, atol=1e-4)

    print("KERNEL_OK")
</pallas_src>

<mosaic_0001>
module attributes {stable_mosaic.version = 11 : i64} {
  func.func private @main(%arg0: i32) attributes {dimension_semantics = [#tpu.dimension_semantics<core_parallel>], iteration_bounds = array<i64: 2>, tpu.core_type = #tpu.core_type<sc_scalar_subcore>, window_params = []} {
    return
  }
}

module attributes {stable_mosaic.version = 11 : i64} {
  func.func private @main(%arg0: i32) attributes {dimension_semantics = [#tpu.dimension_semantics<core_parallel>], iteration_bounds = array<i64: 2>, tpu.core_type = #tpu.core_type<sc_scalar_subcore>, window_params = []} {
    return
  }
}

module attributes {stable_mosaic.version = 11 : i64} {
  func.func @_gnn_fused_kernel(%arg0: i32, %arg1: memref<1x128x8xf32, #tpu.memory_space<vmem>>, %arg2: memref<1x128x128xf32, #tpu.memory_space<vmem>>, %arg3: memref<1x1x128xf32, #tpu.memory_space<vmem>>, %arg4: memref<8x256xf32, #tpu.memory_space<vmem>>, %arg5: memref<1x256xf32, #tpu.memory_space<vmem>>, %arg6: memref<1x64xf32, #tpu.memory_space<vmem>>, %arg7: memref<64x256xf32, #tpu.memory_space<vmem>>, %arg8: memref<1x256xf32, #tpu.memory_space<vmem>>, %arg9: memref<1x64xf32, #tpu.memory_space<vmem>>, %arg10: memref<64x256xf32, #tpu.memory_space<vmem>>, %arg11: memref<1x256xf32, #tpu.memory_space<vmem>>, %arg12: memref<1x64xf32, #tpu.memory_space<vmem>>, %arg13: memref<1x64xf32, #tpu.memory_space<vmem>>, %arg14: memref<1x64xf32, #tpu.memory_space<vmem>>, %arg15: memref<64x32xf32, #tpu.memory_space<vmem>>, %arg16: memref<1x32xf32, #tpu.memory_space<vmem>>, %arg17: memref<32x10xf32, #tpu.memory_space<vmem>>, %arg18: memref<1x10xf32, #tpu.memory_space<vmem>>, %arg19: memref<1x1x10xf32, #tpu.memory_space<vmem>>) attributes {dimension_semantics = [#tpu.dimension_semantics<parallel>], iteration_bounds = array<i64: 2>, scalar_prefetch = 0 : i64, scratch_operands = 0 : i64, tpu.core_type = #tpu.core_type<tc>, window_params = [{transform_indices = @transform_0, window_bounds = array<i64: 1, 128, 8>}, {transform_indices = @transform_1, window_bounds = array<i64: 1, 128, 128>}, {transform_indices = @transform_2, window_bounds = array<i64: 1, 1, 128>}, {pipeline_mode = #tpu.pipeline_mode<synchronous>, transform_indices = @transform_3, window_bounds = array<i64: 8, 256>}, {pipeline_mode = #tpu.pipeline_mode<synchronous>, transform_indices = @transform_4, window_bounds = array<i64: 1, 256>}, {pipeline_mode = #tpu.pipeline_mode<synchronous>, transform_indices = @transform_5, window_bounds = array<i64: 1, 64>}, {pipeline_mode = #tpu.pipeline_mode<synchronous>, transform_indices = @transform_6, window_bounds = array<i64: 64, 256>}, {pipeline_mode = #tpu.pipeline_mode<synchronous>, transform_indices = @transform_7, window_bounds = array<i64: 1, 256>}, {pipeline_mode = #tpu.pipeline_mode<synchronous>, transform_indices = @transform_8, window_bounds = array<i64: 1, 64>}, {pipeline_mode = #tpu.pipeline_mode<synchronous>, transform_indices = @transform_9, window_bounds = array<i64: 64, 256>}, {pipeline_mode = #tpu.pipeline_mode<synchronous>, transform_indices = @transform_10, window_bounds = array<i64: 1, 256>}, {pipeline_mode = #tpu.pipeline_mode<synchronous>, transform_indices = @transform_11, window_bounds = array<i64: 1, 64>}, {pipeline_mode = #tpu.pipeline_mode<synchronous>, transform_indices = @transform_12, window_bounds = array<i64: 1, 64>}, {pipeline_mode = #tpu.pipeline_mode<synchronous>, transform_indices = @transform_13, window_bounds = array<i64: 1, 64>}, {pipeline_mode = #tpu.pipeline_mode<synchronous>, transform_indices = @transform_14, window_bounds = array<i64: 64, 32>}, {pipeline_mode = #tpu.pipeline_mode<synchronous>, transform_indices = @transform_15, window_bounds = array<i64: 1, 32>}, {pipeline_mode = #tpu.pipeline_mode<synchronous>, transform_indices = @transform_16, window_bounds = array<i64: 32, 10>}, {pipeline_mode = #tpu.pipeline_mode<synchronous>, transform_indices = @transform_17, window_bounds = array<i64: 1, 10>}, {transform_indices = @transform_18, window_bounds = array<i64: 1, 1, 10>}]} {
    %c0 = arith.constant 0 : index
    %c0_0 = arith.constant 0 : index
    %c0_1 = arith.constant 0 : index
    %0 = vector.load %arg2[%c0, %c0_0, %c0_1] : memref<1x128x128xf32, #tpu.memory_space<vmem>>, vector<1x128x128xf32>
    %1 = vector.shape_cast %0 : vector<1x128x128xf32> to vector<128x128xf32>
    %c0_2 = arith.constant 0 : index
    %c0_3 = arith.constant 0 : index
    %c0_4 = arith.constant 0 : index
    %2 = vector.load %arg1[%c0_2, %c0_3, %c0_4] : memref<1x128x8xf32, #tpu.memory_space<vmem>>, vector<1x128x8xf32>
    %3 = vector.shape_cast %2 : vector<1x128x8xf32> to vector<128x8xf32>
    %c0_5 = arith.constant 0 : index
    %c0_6 = arith.constant 0 : index
    %4 = vector.load %arg4[%c0_5, %c0_6] : memref<8x256xf32, #tpu.memory_space<vmem>>, vector<8x256xf32>
    %cst = arith.constant dense<0.000000e+00> : vector<128x256xf32>
    %5 = tpu.matmul %3, %4, %cst {dimension_numbers = #tpu.dot_dimension_numbers<[1], [0], [0], [1], [0, 0, 1, 1], [], []>} : vector<128x8xf32>, vector<8x256xf32>, vector<128x256xf32> -> vector<128x256xf32>
    %c0_7 = arith.constant 0 : index
    %c0_8 = arith.constant 0 : index
    %6 = vector.load %arg5[%c0_7, %c0_8] : memref<1x256xf32, #tpu.memory_space<vmem>>, vector<1x256xf32>
    %7 = vector.broadcast %6 : vector<1x256xf32> to vector<128x256xf32>
    %8 = arith.addf %5, %7 : vector<128x256xf32>
    %9 = vector.extract_strided_slice %8 {offsets = [0, 0], sizes = [128, 64], strides = [1, 1]} : vector<128x256xf32> to vector<128x64xf32>
    %10 = vector.extract_strided_slice %8 {offsets = [0, 64], sizes = [128, 64], strides = [1, 1]} : vector<128x256xf32> to vector<128x64xf32>
    %11 = vector.extract_strided_slice %8 {offsets = [0, 128], sizes = [128, 64], strides = [1, 1]} : vector<128x256xf32> to vector<128x64xf32>
    %12 = vector.extract_strided_slice %8 {offsets = [0, 192], sizes = [128, 64], strides = [1, 1]} : vector<128x256xf32> to vector<128x64xf32>
    %cst_9 = arith.constant dense<0.000000e+00> : vector<128x64xf32>
    %13 = tpu.matmul %1, %10, %cst_9 {dimension_numbers = #tpu.dot_dimension_numbers<[1], [0], [0], [1], [0, 0, 1, 1], [], []>} : vector<128x128xf32>, vector<128x64xf32>, vector<128x64xf32> -> vector<128x64xf32>
    %c0_10 = arith.constant 0 : index
    %c0_11 = arith.constant 0 : index
    %14 = vector.load %arg6[%c0_10, %c0_11] : memref<1x64xf32, #tpu.memory_space<vmem>>, vector<1x64xf32>
    %15 = vector.broadcast %14 : vector<1x64xf32> to vector<128x64xf32>
    %16 = arith.addf %13, %15 : vector<128x64xf32>
    %17 = arith.addf %9, %16 : vector<128x64xf32>
    %18 = arith.mulf %11, %12 : vector<128x64xf32>
    %19 = arith.addf %17, %18 : vector<128x64xf32>
    %cst_12 = arith.constant 0.000000e+00 : f32
    %20 = vector.broadcast %cst_12 : f32 to vector<128x64xf32>
    %21 = arith.maximumf %19, %20 : vector<128x64xf32>
    %c0_13 = arith.constant 0 : index
    %c0_14 = arith.constant 0 : index
    %22 = vector.load %arg7[%c0_13, %c0_14] : memref<64x256xf32, #tpu.memory_space<vmem>>, vector<64x256xf32>
    %cst_15 = arith.constant dense<0.000000e+00> : vector<128x256xf32>
    %23 = tpu.matmul %21, %22, %cst_15 {dimension_numbers = #tpu.dot_dimension_numbers<[1], [0], [0], [1], [0, 0, 1, 1], [], []>} : vector<128x64xf32>, vector<64x256xf32>, vector<128x256xf32> -> vector<128x256xf32>
    %c0_16 = arith.constant 0 : index
    %c0_17 = arith.constant 0 : index
    %24 = vector.load %arg8[%c0_16, %c0_17] : memref<1x256xf32, #tpu.memory_space<vmem>>, vector<1x256xf32>
    %25 = vector.broadcast %24 : vector<1x256xf32> to vector<128x256xf32>
    %26 = arith.addf %23, %25 : vector<128x256xf32>
    %27 = vector.extract_strided_slice %26 {offsets = [0, 0], sizes = [128, 64], strides = [1, 1]} : vector<128x256xf32> to vector<128x64xf32>
    %28 = vector.extract_strided_slice %26 {offsets = [0, 64], sizes = [128, 64], strides = [1, 1]} : vector<128x256xf32> to vector<128x64xf32>
    %29 = vector.extract_strided_slice %26 {offsets = [0, 128], sizes = [128, 64], strides = [1, 1]} : vector<128x256xf32> to vector<128x64xf32>
    %30 = vector.extract_strided_slice %26 {offsets = [0, 192], sizes = [128, 64], strides = [1, 1]} : vector<128x256xf32> to vector<128x64xf32>
    %cst_18 = arith.constant dense<0.000000e+00> : vector<128x64xf32>
    %31 = tpu.matmul %1, %28, %cst_18 {dimension_numbers = #tpu.dot_dimension_numbers<[1], [0], [0], [1], [0, 0, 1, 1], [], []>} : vector<128x128xf32>, vector<128x64xf32>, vector<128x64xf32> -> vector<128x64xf32>
    %c0_19 = arith.constant 0 : index
    %c0_20 = arith.constant 0 : index
    %32 = vector.load %arg9[%c0_19, %c0_20] : memref<1x64xf32, #tpu.memory_space<vmem>>, vector<1x64xf32>
    %33 = vector.broadcast %32 : vector<1x64xf32> to vector<128x64xf32>
    %34 = arith.addf %31, %33 : vector<128x64xf32>
    %35 = arith.addf %27, %34 : vector<128x64xf32>
    %36 = arith.mulf %29, %30 : vector<128x64xf32>
    %37 = arith.addf %35, %36 : vector<128x64xf32>
    %cst_21 = arith.constant 0.000000e+00 : f32
    %38 = vector.broadcast %cst_21 : f32 to vector<128x64xf32>
    %39 = arith.maximumf %37, %38 : vector<128x64xf32>
    %c0_22 = arith.constant 0 : index
    %c0_23 = arith.constant 0 : index
    %40 = vector.load %arg10[%c0_22, %c0_23] : memref<64x256xf32, #tpu.memory_space<vmem>>, vector<64x256xf32>
    %cst_24 = arith.constant dense<0.000000e+00> : vector<128x256xf32>
    %41 = tpu.matmul %39, %40, %cst_24 {dimension_numbers = #tpu.dot_dimension_numbers<[1], [0], [0], [1], [0, 0, 1, 1], [], []>} : vector<128x64xf32>, vector<64x256xf32>, vector<128x256xf32> -> vector<128x256xf32>
    %c0_25 = arith.constant 0 : index
    %c0_26 = arith.constant 0 : index
    %42 = vector.load %arg11[%c0_25, %c0_26] : memref<1x256xf32, #tpu.memory_space<vmem>>, vector<1x256xf32>
    %43 = vector.broadcast %42 : vector<1x256xf32> to vector<128x256xf32>
    %44 = arith.addf %41, %43 : vector<128x256xf32>
    %45 = vector.extract_strided_slice %44 {offsets = [0, 0], sizes = [128, 64], strides = [1, 1]} : vector<128x256xf32> to vector<128x64xf32>
    %46 = vector.extract_strided_slice %44 {offsets = [0, 64], sizes = [128, 64], strides = [1, 1]} : vector<128x256xf32> to vector<128x64xf32>
    %47 = vector.extract_strided_slice %44 {offsets = [0, 128], sizes = [128, 64], strides = [1, 1]} : vector<128x256xf32> to vector<128x64xf32>
    %48 = vector.extract_strided_slice %44 {offsets = [0, 192], sizes = [128, 64], strides = [1, 1]} : vector<128x256xf32> to vector<128x64xf32>
    %cst_27 = arith.constant dense<0.000000e+00> : vector<128x64xf32>
    %49 = tpu.matmul %1, %46, %cst_27 {dimension_numbers = #tpu.dot_dimension_numbers<[1], [0], [0], [1], [0, 0, 1, 1], [], []>} : vector<128x128xf32>, vector<128x64xf32>, vector<128x64xf32> -> vector<128x64xf32>
    %c0_28 = arith.constant 0 : index
    %c0_29 = arith.constant 0 : index
    %50 = vector.load %arg12[%c0_28, %c0_29] : memref<1x64xf32, #tpu.memory_space<vmem>>, vector<1x64xf32>
    %51 = vector.broadcast %50 : vector<1x64xf32> to vector<128x64xf32>
    %52 = arith.addf %49, %51 : vector<128x64xf32>
    %53 = arith.addf %45, %52 : vector<128x64xf32>
    %54 = arith.mulf %47, %48 : vector<128x64xf32>
    %55 = arith.addf %53, %54 : vector<128x64xf32>
    %cst_30 = arith.constant 0.000000e+00 : f32
    %56 = vector.broadcast %cst_30 : f32 to vector<128x64xf32>
    %57 = arith.maximumf %55, %56 : vector<128x64xf32>
    %c0_31 = arith.constant 0 : index
    %c0_32 = arith.constant 0 : index
    %c0_33 = arith.constant 0 : index
    %58 = vector.load %arg3[%c0_31, %c0_32, %c0_33] : memref<1x1x128xf32, #tpu.memory_space<vmem>>, vector<1x1x128xf32>
    %59 = vector.shape_cast %58 : vector<1x1x128xf32> to vector<1x128xf32>
    %cst_34 = arith.constant dense<0.000000e+00> : vector<1x64xf32>
    %60 = tpu.matmul %59, %57, %cst_34 {dimension_numbers = #tpu.dot_dimension_numbers<[1], [0], [0], [1], [0, 0, 1, 1], [], []>} : vector<1x128xf32>, vector<128x64xf32>, vector<1x64xf32> -> vector<1x64xf32>
    %c0_35 = arith.constant 0 : index
    %c0_36 = arith.constant 0 : index
    %61 = vector.load %arg13[%c0_35, %c0_36] : memref<1x64xf32, #tpu.memory_space<vmem>>, vector<1x64xf32>
    %62 = arith.mulf %60, %61 : vector<1x64xf32>
    %c0_37 = arith.constant 0 : index
    %c0_38 = arith.constant 0 : index
    %63 = vector.load %arg14[%c0_37, %c0_38] : memref<1x64xf32, #tpu.memory_space<vmem>>, vector<1x64xf32>
    %64 = arith.addf %62, %63 : vector<1x64xf32>
    %c0_39 = arith.constant 0 : index
    %c0_40 = arith.constant 0 : index
    %65 = vector.load %arg15[%c0_39, %c0_40] : memref<64x32xf32, #tpu.memory_space<vmem>>, vector<64x32xf32>
    %cst_41 = arith.constant dense<0.000000e+00> : vector<1x32xf32>
    %66 = tpu.matmul %64, %65, %cst_41 {dimension_numbers = #tpu.dot_dimension_numbers<[1], [0], [0], [1], [0, 0, 1, 1], [], []>} : vector<1x64xf32>, vector<64x32xf32>, vector<1x32xf32> -> vector<1x32xf32>
    %c0_42 = arith.constant 0 : index
    %c0_43 = arith.constant 0 : index
    %67 = vector.load %arg16[%c0_42, %c0_43] : memref<1x32xf32, #tpu.memory_space<vmem>>, vector<1x32xf32>
    %68 = arith.addf %66, %67 : vector<1x32xf32>
    %cst_44 = arith.constant 0.000000e+00 : f32
    %69 = vector.broadcast %cst_44 : f32 to vector<1x32xf32>
    %70 = arith.maximumf %68, %69 : vector<1x32xf32>
    %c0_45 = arith.constant 0 : index
    %c0_46 = arith.constant 0 : index
    %71 = vector.load %arg17[%c0_45, %c0_46] : memref<32x10xf32, #tpu.memory_space<vmem>>, vector<32x10xf32>
    %cst_47 = arith.constant dense<0.000000e+00> : vector<1x10xf32>
    %72 = tpu.matmul %70, %71, %cst_47 {dimension_numbers = #tpu.dot_dimension_numbers<[1], [0], [0], [1], [0, 0, 1, 1], [], []>} : vector<1x32xf32>, vector<32x10xf32>, vector<1x10xf32> -> vector<1x10xf32>
    %c0_48 = arith.constant 0 : index
    %c0_49 = arith.constant 0 : index
    %73 = vector.load %arg18[%c0_48, %c0_49] : memref<1x10xf32, #tpu.memory_space<vmem>>, vector<1x10xf32>
    %74 = arith.addf %72, %73 : vector<1x10xf32>
    %cst_50 = arith.constant dense<0xFF800000> : vector<1xf32>
    %75 = vector.multi_reduction <maximumf>, %74, %cst_50 [1] : vector<1x10xf32> to vector<1xf32>
    %76 = vector.shape_cast %75 : vector<1xf32> to vector<1x1xf32>
    %77 = vector.broadcast %76 : vector<1x1xf32> to vector<1x10xf32>
    %78 = arith.subf %74, %77 : vector<1x10xf32>
    %79 = math.exp %78 : vector<1x10xf32>
    %cst_51 = arith.constant dense<0.000000e+00> : vector<1xf32>
    %80 = vector.multi_reduction <add>, %79, %cst_51 [1] : vector<1x10xf32> to vector<1xf32>
    %81 = vector.shape_cast %80 : vector<1xf32> to vector<1x1xf32>
    %82 = math.log %81 : vector<1x1xf32>
    %83 = arith.addf %76, %82 : vector<1x1xf32>
    %84 = vector.broadcast %83 : vector<1x1xf32> to vector<1x10xf32>
    %85 = arith.subf %74, %84 : vector<1x10xf32>
    %c0_52 = arith.constant 0 : index
    %c0_53 = arith.constant 0 : index
    %c0_54 = arith.constant 0 : index
    %86 = vector.load %arg19[%c0_52, %c0_53, %c0_54] : memref<1x1x10xf32, #tpu.memory_space<vmem>>, vector<1x1x10xf32>
    %87 = vector.shape_cast %86 : vector<1x1x10xf32> to vector<1x10xf32>
    %88 = vector.shape_cast %85 : vector<1x10xf32> to vector<1x1x10xf32>
    tpu.vector_store %arg19[%c0_52, %c0_53, %c0_54], %88 {strides = array<i32>} : memref<1x1x10xf32, #tpu.memory_space<vmem>>, vector<1x1x10xf32>,
    return
  }
  func.func @transform_0(%arg0: i32) -> (i32, i32, i32) {
    %c0_i32 = arith.constant 0 : i32
    %c0_i32_0 = arith.constant 0 : i32
    %c0_i32_1 = arith.constant 0 : i32
    return %arg0, %c0_i32, %c0_i32_0 : i32, i32, i32
  }
  func.func @transform_1(%arg0: i32) -> (i32, i32, i32) {
    %c0_i32 = arith.constant 0 : i32
    %c0_i32_0 = arith.constant 0 : i32
    %c0_i32_1 = arith.constant 0 : i32
    return %arg0, %c0_i32, %c0_i32_0 : i32, i32, i32
  }
  func.func @transform_2(%arg0: i32) -> (i32, i32, i32) {
    %c0_i32 = arith.constant 0 : i32
    %c0_i32_0 = arith.constant 0 : i32
    %c0_i32_1 = arith.constant 0 : i32
    return %arg0, %c0_i32, %c0_i32_0 : i32, i32, i32
  }
  func.func @transform_3(%arg0: i32) -> (i32, i32) {
    %c0_i32 = arith.constant 0 : i32
    %c0_i32_0 = arith.constant 0 : i32
    %c0_i32_1 = arith.constant 0 : i32
    return %c0_i32, %c0_i32_0 : i32, i32
  }
  func.func @transform_4(%arg0: i32) -> (i32, i32) {
    %c0_i32 = arith.constant 0 : i32
    %c0_i32_0 = arith.constant 0 : i32
    %c0_i32_1 = arith.constant 0 : i32
    return %c0_i32, %c0_i32_0 : i32, i32
  }
  func.func @transform_5(%arg0: i32) -> (i32, i32) {
    %c0_i32 = arith.constant 0 : i32
    %c0_i32_0 = arith.constant 0 : i32
    %c0_i32_1 = arith.constant 0 : i32
    return %c0_i32, %c0_i32_0 : i32, i32
  }
  func.func @transform_6(%arg0: i32) -> (i32, i32) {
    %c0_i32 = arith.constant 0 : i32
    %c0_i32_0 = arith.constant 0 : i32
    %c0_i32_1 = arith.constant 0 : i32
    return %c0_i32, %c0_i32_0 : i32, i32
  }
  func.func @transform_7(%arg0: i32) -> (i32, i32) {
    %c0_i32 = arith.constant 0 : i32
    %c0_i32_0 = arith.constant 0 : i32
    %c0_i32_1 = arith.constant 0 : i32
    return %c0_i32, %c0_i32_0 : i32, i32
  }
  func.func @transform_8(%arg0: i32) -> (i32, i32) {
    %c0_i32 = arith.constant 0 : i32
    %c0_i32_0 = arith.constant 0 : i32
    %c0_i32_1 = arith.constant 0 : i32
    return %c0_i32, %c0_i32_0 : i32, i32
  }
  func.func @transform_9(%arg0: i32) -> (i32, i32) {
    %c0_i32 = arith.constant 0 : i32
    %c0_i32_0 = arith.constant 0 : i32
    %c0_i32_1 = arith.constant 0 : i32
    return %c0_i32, %c0_i32_0 : i32, i32
  }
  func.func @transform_10(%arg0: i32) -> (i32, i32) {
    %c0_i32 = arith.constant 0 : i32
    %c0_i32_0 = arith.constant 0 : i32
    %c0_i32_1 = arith.constant 0 : i32
    return %c0_i32, %c0_i32_0 : i32, i32
  }
  func.func @transform_11(%arg0: i32) -> (i32, i32) {
    %c0_i32 = arith.constant 0 : i32
    %c0_i32_0 = arith.constant 0 : i32
    %c0_i32_1 = arith.constant 0 : i32
    return %c0_i32, %c0_i32_0 : i32, i32
  }
  func.func @transform_12(%arg0: i32) -> (i32, i32) {
    %c0_i32 = arith.constant 0 : i32
    %c0_i32_0 = arith.constant 0 : i32
    %c0_i32_1 = arith.constant 0 : i32
    return %c0_i32, %c0_i32_0 : i32, i32
  }
  func.func @transform_13(%arg0: i32) -> (i32, i32) {
    %c0_i32 = arith.constant 0 : i32
    %c0_i32_0 = arith.constant 0 : i32
    %c0_i32_1 = arith.constant 0 : i32
    return %c0_i32, %c0_i32_0 : i32, i32
  }
  func.func @transform_14(%arg0: i32) -> (i32, i32) {
    %c0_i32 = arith.constant 0 : i32
    %c0_i32_0 = arith.constant 0 : i32
    %c0_i32_1 = arith.constant 0 : i32
    return %c0_i32, %c0_i32_0 : i32, i32
  }
  func.func @transform_15(%arg0: i32) -> (i32, i32) {
    %c0_i32 = arith.constant 0 : i32
    %c0_i32_0 = arith.constant 0 : i32
    %c0_i32_1 = arith.constant 0 : i32
    return %c0_i32, %c0_i32_0 : i32, i32
  }
  func.func @transform_16(%arg0: i32) -> (i32, i32) {
    %c0_i32 = arith.constant 0 : i32
    %c0_i32_0 = arith.constant 0 : i32
    %c0_i32_1 = arith.constant 0 : i32
    return %c0_i32, %c0_i32_0 : i32, i32
  }
  func.func @transform_17(%arg0: i32) -> (i32, i32) {
    %c0_i32 = arith.constant 0 : i32
    %c0_i32_0 = arith.constant 0 : i32
    %c0_i32_1 = arith.constant 0 : i32
    return %c0_i32, %c0_i32_0 : i32, i32
  }
  func.func @transform_18(%arg0: i32) -> (i32, i32, i32) {
    %c0_i32 = arith.constant 0 : i32
    %c0_i32_0 = arith.constant 0 : i32
    %c0_i32_1 = arith.constant 0 : i32
    return %arg0, %c0_i32, %c0_i32_0 : i32, i32, i32
  }
}

</mosaic_0001>

<llo_original>
// kernel: gnnml1_forward.1
$region0: #{gnnml1_forward.1}
  #allocation0 [shape = 'u32[]', space=smem, size = 0x4, offset = 0x4, fixed_abs, tag = 'smem constant byte address 0x4 - core index']
  #allocation1 [shape = 'u32[144,128]{1,0:T(1,128)}', space=vmem, size = 0x12000, scoped, tag = 'internal scratch']
  %s0 = inlined_call_operand.vmem [shape: f32[2,128,8], index: 0, kind: input, shape index: {}]
  %s1 = inlined_call_operand.hbm [shape: f32[2,128,128], index: 1, kind: input, shape index: {}]
  %s2 = inlined_call_operand.vmem [shape: f32[2,1,128], index: 2, kind: input, shape index: {}]
  %s3 = inlined_call_operand.vmem [shape: f32[8,256], index: 3, kind: input, shape index: {}]
  %s4 = inlined_call_operand.vmem [shape: f32[1,256], index: 4, kind: input, shape index: {}]
  %s5 = inlined_call_operand.vmem [shape: f32[1,64], index: 5, kind: input, shape index: {}]
  %s6 = inlined_call_operand.vmem [shape: f32[64,256], index: 6, kind: input, shape index: {}]
  %s7 = inlined_call_operand.vmem [shape: f32[1,256], index: 7, kind: input, shape index: {}]
  %s8 = inlined_call_operand.vmem [shape: f32[1,64], index: 8, kind: input, shape index: {}]
  %s9 = inlined_call_operand.vmem [shape: f32[64,256], index: 9, kind: input, shape index: {}]
  %s10 = inlined_call_operand.vmem [shape: f32[1,256], index: 10, kind: input, shape index: {}]
  %s11 = inlined_call_operand.vmem [shape: f32[1,64], index: 11, kind: input, shape index: {}]
  %s12 = inlined_call_operand.vmem [shape: f32[1,64], index: 12, kind: input, shape index: {}]
  %s13 = inlined_call_operand.vmem [shape: f32[1,64], index: 13, kind: input, shape index: {}]
  %s14 = inlined_call_operand.vmem [shape: f32[64,32], index: 14, kind: input, shape index: {}]
  %s15 = inlined_call_operand.vmem [shape: f32[1,32], index: 15, kind: input, shape index: {}]
  %s16 = inlined_call_operand.vmem [shape: f32[32,10], index: 16, kind: input, shape index: {}]
  %s17 = inlined_call_operand.vmem [shape: f32[1,10], index: 17, kind: input, shape index: {}]
  %s18 = inlined_call_operand.hbm [shape: f32[2,1,10], index: 18, kind: output, shape index: {}]
  %s19 = sld [smem:[#allocation0]]
  $region109: #{gnnml1_forward.1} parent=0
    _
  %s21 = ssub.s32 1, %s19
  %s22 = scalar_select 0, %s21, %s19
  $region1: #{gnnml1_forward.1} parent=0
    #allocation2 [shape = 'u8[131072]{0}', space=vmem, size = 0x20000, scoped, tag = 'input window, operand 1']
    #allocation3 [shape = 's32[2]{0}', space=sflag, size = 0x8, scoped, tag = 'scoped memory for gnnml1_forward.1']
    #allocation4 [shape = 's32[2]{0}', space=sflag, size = 0x8, scoped, tag = 'scoped memory for gnnml1_forward.1']
    #allocation5 [shape = 'u8[1024]{0}', space=vmem, size = 0x400, scoped, tag = 'output window, operand 0']
    %23 = vsyncpa [#allocation3], 0
    %s24 = scalar_lea.sflag [#allocation3], 1
    %25 = vsyncpa %s24, 0
    %26 = vsyncpa [#allocation4], 0
    %s27 = scalar_lea.sflag [#allocation4], 1
    %28 = vsyncpa %s27, 0
    loop: start=0, step=1, limit=4
    $region2: #{gnnml1_forward.1} parent=1 // loop_pre_header
      _
    $region3: #{gnnml1_forward.1} parent=1 // loop_header
      %s30 = sphi 0, %s34
      %p31 = scmp.ge.s32.totalorder %s30, 4
      %s40 = sphi 0, %s42
      %s43 = sphi 0, %s40
      %s44 = sphi 0, %s43
      %s60 = sphi 0, %s44
      %s66 = sphi 0, %s68
      %s69 = sphi 0, %s66
      %s70 = sphi 0, %s69
      %s86 = sphi 0, %s70
      %s92 = sphi 0, %s94
      %s95 = sphi 0, %s92
      %s96 = sphi 0, %s95
      %s112 = sphi 0, %s96
      %s116 = sphi 0, %s116
      %s118 = sphi 0, %s116
      %s119 = sphi 0, %s118
      %s133 = sphi 0, %s119
      %s137 = sphi 0, %s137
      %s139 = sphi 0, %s137
      %s140 = sphi 0, %s139
      %s154 = sphi 0, %s140
      %s158 = sphi 0, %s158
      %s160 = sphi 0, %s158
      %s161 = sphi 0, %s160
      %s175 = sphi 0, %s161
      %s179 = sphi 0, %s179
      %s181 = sphi 0, %s179
      %s182 = sphi 0, %s181
      %s196 = sphi 0, %s182
      %s200 = sphi 0, %s200
      %s202 = sphi 0, %s200
      %s203 = sphi 0, %s202
      %s217 = sphi 0, %s203
      %s221 = sphi 0, %s221
      %s223 = sphi 0, %s221
      %s224 = sphi 0, %s223
      %s238 = sphi 0, %s224
      %s242 = sphi 0, %s242
      %s244 = sphi 0, %s242
      %s245 = sphi 0, %s244
      %s259 = sphi 0, %s245
      %s263 = sphi 0, %s263
      %s265 = sphi 0, %s263
      %s266 = sphi 0, %s265
      %s280 = sphi 0, %s266
      %s284 = sphi 0, %s284
      %s286 = sphi 0, %s284
      %s287 = sphi 0, %s286
      %s301 = sphi 0, %s287
      %s305 = sphi 0, %s305
      %s307 = sphi 0, %s305
      %s308 = sphi 0, %s307
      %s322 = sphi 0, %s308
      %s326 = sphi 0, %s326
      %s328 = sphi 0, %s326
      %s329 = sphi 0, %s328
      %s343 = sphi 0, %s329
      %s347 = sphi 0, %s347
      %s349 = sphi 0, %s347
      %s350 = sphi 0, %s349
      %s364 = sphi 0, %s350
      %s368 = sphi 0, %s368
      %s370 = sphi 0, %s368
      %s371 = sphi 0, %s370
      %s385 = sphi 0, %s371
      %s389 = sphi 0, %s389
      %s391 = sphi 0, %s389
      %s392 = sphi 0, %s391
      %s406 = sphi 0, %s392
      %s410 = sphi 0, %s410
      %s412 = sphi 0, %s410
      %s413 = sphi 0, %s412
      %s427 = sphi 0, %s413
      %s433 = sphi 0, %s435
      %s436 = sphi 0, %s433
      %s437 = sphi 0, %s436
      %s453 = sphi 0, %s437
    $region4: #{gnnml1_forward.1} parent=1 // loop_header_branch
      %33 = sbr.rel (%p31) target = $region8
    $region5: #{gnnml1_forward.1} parent=1 // loop_body
      %s35 = ssub.s32 %s30, 1
      %s36 = ssub.s32 %s30, 2
      %s37 = sadd.s32 %s30, 1
      %s38 = ssub.s32 %s30, %s37
      %p39 = scmp.eq.s32.totalorder %s38, 0
      %s41 = sadd.s32 %s40, 1
      %s42 = scalar_select %p39, %s40, %s41
      %p45 = pneg %p39
      %p46 = scmp.eq.s32.totalorder %s30, 1
      %p47 = por %p45, %p46
      %p48 = scmp.ne.s32.totalorder %s40, %s43
      %p49 = scmp.eq.s32.totalorder %s30, 0
      %p50 = por %p48, %p49
      %p51 = scmp.ne.s32.totalorder %s40, %s43
      %p52 = scmp.eq.s32.totalorder %s35, 1
      %p53 = por %p51, %p52
      %p54 = scmp.ne.s32.totalorder %s43, %s44
      %p55 = scmp.eq.s32.totalorder %s35, 0
      %p56 = por %p54, %p55
      %p57 = scmp.ne.s32.totalorder %s43, %s44
      %p58 = scmp.eq.s32.totalorder %s36, 1
      %p59 = por %p57, %p58
      %p61 = scmp.ne.s32.totalorder %s44, %s60
      %p62 = scmp.eq.s32.totalorder %s36, 0
      %p63 = por %p61, %p62
      %s64 = ssub.s32 %s30, %s37
      %p65 = scmp.eq.s32.totalorder %s64, 0
      %s67 = sadd.s32 %s66, 1
      %s68 = scalar_select %p65, %s66, %s67
      %p71 = pneg %p65
      %p72 = scmp.eq.s32.totalorder %s30, 1
      %p73 = por %p71, %p72
      %p74 = scmp.ne.s32.totalorder %s66, %s69
      %p75 = scmp.eq.s32.totalorder %s30, 0
      %p76 = por %p74, %p75
      %p77 = scmp.ne.s32.totalorder %s66, %s69
      %p78 = scmp.eq.s32.totalorder %s35, 1
      %p79 = por %p77, %p78
      %p80 = scmp.ne.s32.totalorder %s69, %s70
      %p81 = scmp.eq.s32.totalorder %s35, 0
      %p82 = por %p80, %p81
      %p83 = scmp.ne.s32.totalorder %s69, %s70
      %p84 = scmp.eq.s32.totalorder %s36, 1
      %p85 = por %p83, %p84
      %p87 = scmp.ne.s32.totalorder %s70, %s86
      %p88 = scmp.eq.s32.totalorder %s36, 0
      %p89 = por %p87, %p88
      %s90 = ssub.s32 %s30, %s37
      %p91 = scmp.eq.s32.totalorder %s90, 0
      %s93 = sadd.s32 %s92, 1
      %s94 = scalar_select %p91, %s92, %s93
      %p97 = pneg %p91
      %p98 = scmp.eq.s32.totalorder %s30, 1
      %p99 = por %p97, %p98
      %p100 = scmp.ne.s32.totalorder %s92, %s95
      %p101 = scmp.eq.s32.totalorder %s30, 0
      %p102 = por %p100, %p101
      %p103 = scmp.ne.s32.totalorder %s92, %s95
      %p104 = scmp.eq.s32.totalorder %s35, 1
      %p105 = por %p103, %p104
      %p106 = scmp.ne.s32.totalorder %s95, %s96
      %p107 = scmp.eq.s32.totalorder %s35, 0
      %p108 = por %p106, %p107
      %p109 = scmp.ne.s32.totalorder %s95, %s96
      %p110 = scmp.eq.s32.totalorder %s36, 1
      %p111 = por %p109, %p110
      %p113 = scmp.ne.s32.totalorder %s96, %s112
      %p114 = scmp.eq.s32.totalorder %s36, 0
      %p115 = por %p113, %p114
      %s117 = sadd.s32 %s116, 1
      %p120 = scmp.eq.s32.totalorder %s30, 1
      %p121 = scmp.ne.s32.totalorder %s116, %s118
      %p122 = scmp.eq.s32.totalorder %s30, 0
      %p123 = por %p121, %p122
      %p124 = scmp.ne.s32.totalorder %s116, %s118
      %p125 = scmp.eq.s32.totalorder %s35, 1
      %p126 = por %p124, %p125
      %p127 = scmp.ne.s32.totalorder %s118, %s119
      %p128 = scmp.eq.s32.totalorder %s35, 0
      %p129 = por %p127, %p128
      %p130 = scmp.ne.s32.totalorder %s118, %s119
      %p131 = scmp.eq.s32.totalorder %s36, 1
      %p132 = por %p130, %p131
      %p134 = scmp.ne.s32.totalorder %s119, %s133
      %p135 = scmp.eq.s32.totalorder %s36, 0
      %p136 = por %p134, %p135
      %s138 = sadd.s32 %s137, 1
      %p141 = scmp.eq.s32.totalorder %s30, 1
      %p142 = scmp.ne.s32.totalorder %s137, %s139
      %p143 = scmp.eq.s32.totalorder %s30, 0
      %p144 = por %p142, %p143
      %p145 = scmp.ne.s32.totalorder %s137, %s139
      %p146 = scmp.eq.s32.totalorder %s35, 1
      %p147 = por %p145, %p146
      %p148 = scmp.ne.s32.totalorder %s139, %s140
      %p149 = scmp.eq.s32.totalorder %s35, 0
      %p150 = por %p148, %p149
      %p151 = scmp.ne.s32.totalorder %s139, %s140
      %p152 = scmp.eq.s32.totalorder %s36, 1
      %p153 = por %p151, %p152
      %p155 = scmp.ne.s32.totalorder %s140, %s154
      %p156 = scmp.eq.s32.totalorder %s36, 0
      %p157 = por %p155, %p156
      %s159 = sadd.s32 %s158, 1
      %p162 = scmp.eq.s32.totalorder %s30, 1
      %p163 = scmp.ne.s32.totalorder %s158, %s160
      %p164 = scmp.eq.s32.totalorder %s30, 0
      %p165 = por %p163, %p164
      %p166 = scmp.ne.s32.totalorder %s158, %s160
      %p167 = scmp.eq.s32.totalorder %s35, 1
      %p168 = por %p166, %p167
      %p169 = scmp.ne.s32.totalorder %s160, %s161
      %p170 = scmp.eq.s32.totalorder %s35, 0
      %p171 = por %p169, %p170
      %p172 = scmp.ne.s32.totalorder %s160, %s161
      %p173 = scmp.eq.s32.totalorder %s36, 1
      %p174 = por %p172, %p173
      %p176 = scmp.ne.s32.totalorder %s161, %s175
      %p177 = scmp.eq.s32.totalorder %s36, 0
      %p178 = por %p176, %p177
      %s180 = sadd.s32 %s179, 1
      %p183 = scmp.eq.s32.totalorder %s30, 1
      %p184 = scmp.ne.s32.totalorder %s179, %s181
      %p185 = scmp.eq.s32.totalorder %s30, 0
      %p186 = por %p184, %p185
      %p187 = scmp.ne.s32.totalorder %s179, %s181
      %p188 = scmp.eq.s32.totalorder %s35, 1
      %p189 = por %p187, %p188
      %p190 = scmp.ne.s32.totalorder %s181, %s182
      %p191 = scmp.eq.s32.totalorder %s35, 0
      %p192 = por %p190, %p191
      %p193 = scmp.ne.s32.totalorder %s181, %s182
      %p194 = scmp.eq.s32.totalorder %s36, 1
      %p195 = por %p193, %p194
      %p197 = scmp.ne.s32.totalorder %s182, %s196
      %p198 = scmp.eq.s32.totalorder %s36, 0
      %p199 = por %p197, %p198
      %s201 = sadd.s32 %s200, 1
      %p204 = scmp.eq.s32.totalorder %s30, 1
      %p205 = scmp.ne.s32.totalorder %s200, %s202
      %p206 = scmp.eq.s32.totalorder %s30, 0
      %p207 = por %p205, %p206
      %p208 = scmp.ne.s32.totalorder %s200, %s202
      %p209 = scmp.eq.s32.totalorder %s35, 1
      %p210 = por %p208, %p209
      %p211 = scmp.ne.s32.totalorder %s202, %s203
      %p212 = scmp.eq.s32.totalorder %s35, 0
      %p213 = por %p211, %p212
      %p214 = scmp.ne.s32.totalorder %s202, %s203
      %p215 = scmp.eq.s32.totalorder %s36, 1
      %p216 = por %p214, %p215
      %p218 = scmp.ne.s32.totalorder %s203, %s217
      %p219 = scmp.eq.s32.totalorder %s36, 0
      %p220 = por %p218, %p219
      %s222 = sadd.s32 %s221, 1
      %p225 = scmp.eq.s32.totalorder %s30, 1
      %p226 = scmp.ne.s32.totalorder %s221, %s223
      %p227 = scmp.eq.s32.totalorder %s30, 0
      %p228 = por %p226, %p227
      %p229 = scmp.ne.s32.totalorder %s221, %s223
      %p230 = scmp.eq.s32.totalorder %s35, 1
      %p231 = por %p229, %p230
      %p232 = scmp.ne.s32.totalorder %s223, %s224
      %p233 = scmp.eq.s32.totalorder %s35, 0
      %p234 = por %p232, %p233
      %p235 = scmp.ne.s32.totalorder %s223, %s224
      %p236 = scmp.eq.s32.totalorder %s36, 1
      %p237 = por %p235, %p236
      %p239 = scmp.ne.s32.totalorder %s224, %s238
      %p240 = scmp.eq.s32.totalorder %s36, 0
      %p241 = por %p239, %p240
      %s243 = sadd.s32 %s242, 1
      %p246 = scmp.eq.s32.totalorder %s30, 1
      %p247 = scmp.ne.s32.totalorder %s242, %s244
      %p248 = scmp.eq.s32.totalorder %s30, 0
      %p249 = por %p247, %p248
      %p250 = scmp.ne.s32.totalorder %s242, %s244
      %p251 = scmp.eq.s32.totalorder %s35, 1
      %p252 = por %p250, %p251
      %p253 = scmp.ne.s32.totalorder %s244, %s245
      %p254 = scmp.eq.s32.totalorder %s35, 0
      %p255 = por %p253, %p254
      %p256 = scmp.ne.s32.totalorder %s244, %s245
      %p257 = scmp.eq.s32.totalorder %s36, 1
      %p258 = por %p256, %p257
      %p260 = scmp.ne.s32.totalorder %s245, %s259
      %p261 = scmp.eq.s32.totalorder %s36, 0
      %p262 = por %p260, %p261
      %s264 = sadd.s32 %s263, 1
      %p267 = scmp.eq.s32.totalorder %s30, 1
      %p268 = scmp.ne.s32.totalorder %s263, %s265
      %p269 = scmp.eq.s32.totalorder %s30, 0
      %p270 = por %p268, %p269
      %p271 = scmp.ne.s32.totalorder %s263, %s265
      %p272 = scmp.eq.s32.totalorder %s35, 1
      %p273 = por %p271, %p272
      %p274 = scmp.ne.s32.totalorder %s265, %s266
      %p275 = scmp.eq.s32.totalorder %s35, 0
      %p276 = por %p274, %p275
      %p277 = scmp.ne.s32.totalorder %s265, %s266
      %p278 = scmp.eq.s32.totalorder %s36, 1
      %p279 = por %p277, %p278
      %p281 = scmp.ne.s32.totalorder %s266, %s280
      %p282 = scmp.eq.s32.totalorder %s36, 0
      %p283 = por %p281, %p282
      %s285 = sadd.s32 %s284, 1
      %p288 = scmp.eq.s32.totalorder %s30, 1
      %p289 = scmp.ne.s32.totalorder %s284, %s286
      %p290 = scmp.eq.s32.totalorder %s30, 0
      %p291 = por %p289, %p290
      %p292 = scmp.ne.s32.totalorder %s284, %s286
      %p293 = scmp.eq.s32.totalorder %s35, 1
      %p294 = por %p292, %p293
      %p295 = scmp.ne.s32.totalorder %s286, %s287
      %p296 = scmp.eq.s32.totalorder %s35, 0
      %p297 = por %p295, %p296
      %p298 = scmp.ne.s32.totalorder %s286, %s287
      %p299 = scmp.eq.s32.totalorder %s36, 1
      %p300 = por %p298, %p299
      %p302 = scmp.ne.s32.totalorder %s287, %s301
      %p303 = scmp.eq.s32.totalorder %s36, 0
      %p304 = por %p302, %p303
      %s306 = sadd.s32 %s305, 1
      %p309 = scmp.eq.s32.totalorder %s30, 1
      %p310 = scmp.ne.s32.totalorder %s305, %s307
      %p311 = scmp.eq.s32.totalorder %s30, 0
      %p312 = por %p310, %p311
      %p313 = scmp.ne.s32.totalorder %s305, %s307
      %p314 = scmp.eq.s32.totalorder %s35, 1
      %p315 = por %p313, %p314
      %p316 = scmp.ne.s32.totalorder %s307, %s308
      %p317 = scmp.eq.s32.totalorder %s35, 0
      %p318 = por %p316, %p317
      %p319 = scmp.ne.s32.totalorder %s307, %s308
      %p320 = scmp.eq.s32.totalorder %s36, 1
      %p321 = por %p319, %p320
      %p323 = scmp.ne.s32.totalorder %s308, %s322
      %p324 = scmp.eq.s32.totalorder %s36, 0
      %p325 = por %p323, %p324
      %s327 = sadd.s32 %s326, 1
      %p330 = scmp.eq.s32.totalorder %s30, 1
      %p331 = scmp.ne.s32.totalorder %s326, %s328
      %p332 = scmp.eq.s32.totalorder %s30, 0
      %p333 = por %p331, %p332
      %p334 = scmp.ne.s32.totalorder %s326, %s328
      %p335 = scmp.eq.s32.totalorder %s35, 1
      %p336 = por %p334, %p335
      %p337 = scmp.ne.s32.totalorder %s328, %s329
      %p338 = scmp.eq.s32.totalorder %s35, 0
      %p339 = por %p337, %p338
      %p340 = scmp.ne.s32.totalorder %s328, %s329
      %p341 = scmp.eq.s32.totalorder %s36, 1
      %p342 = por %p340, %p341
      %p344 = scmp.ne.s32.totalorder %s329, %s343
      %p345 = scmp.eq.s32.totalorder %s36, 0
      %p346 = por %p344, %p345
      %s348 = sadd.s32 %s347, 1
      %p351 = scmp.eq.s32.totalorder %s30, 1
      %p352 = scmp.ne.s32.totalorder %s347, %s349
      %p353 = scmp.eq.s32.totalorder %s30, 0
      %p354 = por %p352, %p353
      %p355 = scmp.ne.s32.totalorder %s347, %s349
      %p356 = scmp.eq.s32.totalorder %s35, 1
      %p357 = por %p355, %p356
      %p358 = scmp.ne.s32.totalorder %s349, %s350
      %p359 = scmp.eq.s32.totalorder %s35, 0
      %p360 = por %p358, %p359
      %p361 = scmp.ne.s32.totalorder %s349, %s350
      %p362 = scmp.eq.s32.totalorder %s36, 1
      %p363 = por %p361, %p362
      %p365 = scmp.ne.s32.totalorder %s350, %s364
      %p366 = scmp.eq.s32.totalorder %s36, 0
      %p367 = por %p365, %p366
      %s369 = sadd.s32 %s368, 1
      %p372 = scmp.eq.s32.totalorder %s30, 1
      %p373 = scmp.ne.s32.totalorder %s368, %s370
      %p374 = scmp.eq.s32.totalorder %s30, 0
      %p375 = por %p373, %p374
      %p376 = scmp.ne.s32.totalorder %s368, %s370
      %p377 = scmp.eq.s32.totalorder %s35, 1
      %p378 = por %p376, %p377
      %p379 = scmp.ne.s32.totalorder %s370, %s371
      %p380 = scmp.eq.s32.totalorder %s35, 0
      %p381 = por %p379, %p380
      %p382 = scmp.ne.s32.totalorder %s370, %s371
      %p383 = scmp.eq.s32.totalorder %s36, 1
      %p384 = por %p382, %p383
      %p386 = scmp.ne.s32.totalorder %s371, %s385
      %p387 = scmp.eq.s32.totalorder %s36, 0
      %p388 = por %p386, %p387
      %s390 = sadd.s32 %s389, 1
      %p393 = scmp.eq.s32.totalorder %s30, 1
      %p394 = scmp.ne.s32.totalorder %s389, %s391
      %p395 = scmp.eq.s32.totalorder %s30, 0
      %p396 = por %p394, %p395
      %p397 = scmp.ne.s32.totalorder %s389, %s391
      %p398 = scmp.eq.s32.totalorder %s35, 1
      %p399 = por %p397, %p398
      %p400 = scmp.ne.s32.totalorder %s391, %s392
      %p401 = scmp.eq.s32.totalorder %s35, 0
      %p402 = por %p400, %p401
      %p403 = scmp.ne.s32.totalorder %s391, %s392
      %p404 = scmp.eq.s32.totalorder %s36, 1
      %p405 = por %p403, %p404
      %p407 = scmp.ne.s32.totalorder %s392, %s406
      %p408 = scmp.eq.s32.totalorder %s36, 0
      %p409 = por %p407, %p408
      %s411 = sadd.s32 %s410, 1
      %p414 = scmp.eq.s32.totalorder %s30, 1
      %p415 = scmp.ne.s32.totalorder %s410, %s412
      %p416 = scmp.eq.s32.totalorder %s30, 0
      %p417 = por %p415, %p416
      %p418 = scmp.ne.s32.totalorder %s410, %s412
      %p419 = scmp.eq.s32.totalorder %s35, 1
      %p420 = por %p418, %p419
      %p421 = scmp.ne.s32.totalorder %s412, %s413
      %p422 = scmp.eq.s32.totalorder %s35, 0
      %p423 = por %p421, %p422
      %p424 = scmp.ne.s32.totalorder %s412, %s413
      %p425 = scmp.eq.s32.totalorder %s36, 1
      %p426 = por %p424, %p425
      %p428 = scmp.ne.s32.totalorder %s413, %s427
      %p429 = scmp.eq.s32.totalorder %s36, 0
      %p430 = por %p428, %p429
      %s431 = ssub.s32 %s30, %s37
      %p432 = scmp.eq.s32.totalorder %s431, 0
      %s434 = sadd.s32 %s433, 1
      %s435 = scalar_select %p432, %s433, %s434
      %p438 = pneg %p432
      %p439 = scmp.eq.s32.totalorder %s30, 1
      %p440 = por %p438, %p439
      %p441 = scmp.ne.s32.totalorder %s433, %s436
      %p442 = scmp.eq.s32.totalorder %s30, 0
      %p443 = por %p441, %p442
      %p444 = scmp.ne.s32.totalorder %s433, %s436
      %p445 = scmp.eq.s32.totalorder %s35, 1
      %p446 = por %p444, %p445
      %p447 = scmp.ne.s32.totalorder %s436, %s437
      %p448 = scmp.eq.s32.totalorder %s35, 0
      %p449 = por %p447, %p448
      %p450 = scmp.ne.s32.totalorder %s436, %s437
      %p451 = scmp.eq.s32.totalorder %s36, 1
      %p452 = por %p450, %p451
      %p454 = scmp.ne.s32.totalorder %s437, %s453
      %p455 = scmp.eq.s32.totalorder %s36, 0
      %p456 = por %p454, %p455
      %p457 = scmp.le.s32.totalorder 1, %s30
      %p458 = scmp.lt.s32.totalorder %s30, 3
      %p459 = pnand %p457, %p458
      %p460 = pneg %p459
      // Predicated region
      $region9: #{gnnml1_forward.1} parent=5 // pred_check
        _
      $region10: #{gnnml1_forward.1} parent=5 // pred_check_branch
        %462 = sbr.rel (%p459) target = $region12
      $region11: #{gnnml1_forward.1} parent=5 // pred_region
        %s463 = ssub.s32 %s30, 1
        // Predicated region
        $region13: #{gnnml1_forward.1} parent=11 // pred_check
          %p464 = pneg %p129
        $region14: #{gnnml1_forward.1} parent=11 // pred_check_branch
          %466 = sbr.rel (%p464) target = $region16
        $region15: #{gnnml1_forward.1} parent=11 // pred_region
          _
        $region16: #{gnnml1_forward.1} parent=11 // pred_fallthru
          _
        // Predicated region
        $region17: #{gnnml1_forward.1} parent=11 // pred_check
          %p467 = pneg %p150
        $region18: #{gnnml1_forward.1} parent=11 // pred_check_branch
          %469 = sbr.rel (%p467) target = $region20
        $region19: #{gnnml1_forward.1} parent=11 // pred_region
          _
        $region20: #{gnnml1_forward.1} parent=11 // pred_fallthru
          _
        // Predicated region
        $region21: #{gnnml1_forward.1} parent=11 // pred_check
          %p470 = pneg %p171
        $region22: #{gnnml1_forward.1} parent=11 // pred_check_branch
          %472 = sbr.rel (%p470) target = $region24
        $region23: #{gnnml1_forward.1} parent=11 // pred_region
          _
        $region24: #{gnnml1_forward.1} parent=11 // pred_fallthru
          _
        // Predicated region
        $region25: #{gnnml1_forward.1} parent=11 // pred_check
          %p473 = pneg %p192
        $region26: #{gnnml1_forward.1} parent=11 // pred_check_branch
          %475 = sbr.rel (%p473) target = $region28
        $region27: #{gnnml1_forward.1} parent=11 // pred_region
          _
        $region28: #{gnnml1_forward.1} parent=11 // pred_fallthru
          _
        // Predicated region
        $region29: #{gnnml1_forward.1} parent=11 // pred_check
          %p476 = pneg %p213
        $region30: #{gnnml1_forward.1} parent=11 // pred_check_branch
          %478 = sbr.rel (%p476) target = $region32
        $region31: #{gnnml1_forward.1} parent=11 // pred_region
          _
        $region32: #{gnnml1_forward.1} parent=11 // pred_fallthru
          _
        // Predicated region
        $region33: #{gnnml1_forward.1} parent=11 // pred_check
          %p479 = pneg %p234
        $region34: #{gnnml1_forward.1} parent=11 // pred_check_branch
          %481 = sbr.rel (%p479) target = $region36
        $region35: #{gnnml1_forward.1} parent=11 // pred_region
          _
        $region36: #{gnnml1_forward.1} parent=11 // pred_fallthru
          _
        // Predicated region
        $region37: #{gnnml1_forward.1} parent=11 // pred_check
          %p482 = pneg %p255
        $region38: #{gnnml1_forward.1} parent=11 // pred_check_branch
          %484 = sbr.rel (%p482) target = $region40
        $region39: #{gnnml1_forward.1} parent=11 // pred_region
          _
        $region40: #{gnnml1_forward.1} parent=11 // pred_fallthru
          _
        // Predicated region
        $region41: #{gnnml1_forward.1} parent=11 // pred_check
          %p485 = pneg %p276
        $region42: #{gnnml1_forward.1} parent=11 // pred_check_branch
          %487 = sbr.rel (%p485) target = $region44
        $region43: #{gnnml1_forward.1} parent=11 // pred_region
          _
        $region44: #{gnnml1_forward.1} parent=11 // pred_fallthru
          _
        // Predicated region
        $region45: #{gnnml1_forward.1} parent=11 // pred_check
          %p488 = pneg %p297
        $region46: #{gnnml1_forward.1} parent=11 // pred_check_branch
          %490 = sbr.rel (%p488) target = $region48
        $region47: #{gnnml1_forward.1} parent=11 // pred_region
          _
        $region48: #{gnnml1_forward.1} parent=11 // pred_fallthru
          _
        // Predicated region
        $region49: #{gnnml1_forward.1} parent=11 // pred_check
          %p491 = pneg %p318
        $region50: #{gnnml1_forward.1} parent=11 // pred_check_branch
          %493 = sbr.rel (%p491) target = $region52
        $region51: #{gnnml1_forward.1} parent=11 // pred_region
          _
        $region52: #{gnnml1_forward.1} parent=11 // pred_fallthru
          _
        // Predicated region
        $region53: #{gnnml1_forward.1} parent=11 // pred_check
          %p494 = pneg %p339
        $region54: #{gnnml1_forward.1} parent=11 // pred_check_branch
          %496 = sbr.rel (%p494) target = $region56
        $region55: #{gnnml1_forward.1} parent=11 // pred_region
          _
        $region56: #{gnnml1_forward.1} parent=11 // pred_fallthru
          _
        // Predicated region
        $region57: #{gnnml1_forward.1} parent=11 // pred_check
          %p497 = pneg %p360
        $region58: #{gnnml1_forward.1} parent=11 // pred_check_branch
          %499 = sbr.rel (%p497) target = $region60
        $region59: #{gnnml1_forward.1} parent=11 // pred_region
          _
        $region60: #{gnnml1_forward.1} parent=11 // pred_fallthru
          _
        // Predicated region
        $region61: #{gnnml1_forward.1} parent=11 // pred_check
          %p500 = pneg %p381
        $region62: #{gnnml1_forward.1} parent=11 // pred_check_branch
          %502 = sbr.rel (%p500) target = $region64
        $region63: #{gnnml1_forward.1} parent=11 // pred_region
          _
        $region64: #{gnnml1_forward.1} parent=11 // pred_fallthru
          _
        // Predicated region
        $region65: #{gnnml1_forward.1} parent=11 // pred_check
          %p503 = pneg %p402
        $region66: #{gnnml1_forward.1} parent=11 // pred_check_branch
          %505 = sbr.rel (%p503) target = $region68
        $region67: #{gnnml1_forward.1} parent=11 // pred_region
          _
        $region68: #{gnnml1_forward.1} parent=11 // pred_fallthru
          _
        // Predicated region
        $region69: #{gnnml1_forward.1} parent=11 // pred_check
          %p506 = pneg %p423
        $region70: #{gnnml1_forward.1} parent=11 // pred_check_branch
          %508 = sbr.rel (%p506) target = $region72
        $region71: #{gnnml1_forward.1} parent=11 // pred_region
          _
        $region72: #{gnnml1_forward.1} parent=11 // pred_fallthru
          _
      $region12: #{gnnml1_forward.1} parent=5 // pred_fallthru
        _
      %p509 = scmp.lt.s32.totalorder %s30, 2
      // Predicated region
      $region73: #{gnnml1_forward.1} parent=5 // pred_check
        %p510 = pneg %p509
      $region74: #{gnnml1_forward.1} parent=5 // pred_check_branch
        %512 = sbr.rel (%p510) target = $region76
      $region75: #{gnnml1_forward.1} parent=5 // pred_region
        // Predicated region
        $region77: #{gnnml1_forward.1} parent=75 // pred_check
          %p513 = pneg %p50
        $region78: #{gnnml1_forward.1} parent=75 // pred_check_branch
          %515 = sbr.rel (%p513) target = $region80
        $region79: #{gnnml1_forward.1} parent=75 // pred_region
          %p516 = scmp.lt.s32.totalorder %s30, 1
          %s517 = scalar_select %p516, %s30, 1
          %s518 = smul.addr %s517, 16
          %s519 = smul.addr %s518, 8
          %s520 = scalar_lea.vmem %s0, %s519
        $region80: #{gnnml1_forward.1} parent=75 // pred_fallthru
          _
        // Predicated region
        $region81: #{gnnml1_forward.1} parent=75 // pred_check
          %p521 = pneg %p76
        $region82: #{gnnml1_forward.1} parent=75 // pred_check_branch
          %523 = sbr.rel (%p521) target = $region84
        $region83: #{gnnml1_forward.1} parent=75 // pred_region
          %s524 = sand.u32 %s66, 1
          %s525 = scalar_lea.sflag [#allocation3], %s524
          %s526 = sand.u32 %s66, 1
          %s527 = smul.addr %s526, 128
          %s528 = scalar_lea.vmem [#allocation2], %s527
          %s530 = ssub.s32 2048, 2048
          %531 = vsyncadd %s525, %s530
          %s532 = smul.addr %s30, 16
          %s533 = smul.addr %s532, 128
          %s534 = scalar_lea.hbm %s1, %s533
          %s535 = sshll.u32 %s528, 4
          %s536 = int_to_ptr.vmem [resolvable:$true] %s535
          %541 = dma.hbm_to_vmem [thread:$0]  %s534, 2048, %s536, %s525, 128, 128, 8
        $region84: #{gnnml1_forward.1} parent=75 // pred_fallthru
          _
        // Predicated region
        $region85: #{gnnml1_forward.1} parent=75 // pred_check
          %p542 = pneg %p102
        $region86: #{gnnml1_forward.1} parent=75 // pred_check_branch
          %544 = sbr.rel (%p542) target = $region88
        $region87: #{gnnml1_forward.1} parent=75 // pred_region
          %p545 = scmp.lt.s32.totalorder %s30, 1
          %s546 = scalar_select %p545, %s30, 1
          %s547 = scalar_lea.vmem %s2, %s546
        $region88: #{gnnml1_forward.1} parent=75 // pred_fallthru
          _
      $region76: #{gnnml1_forward.1} parent=5 // pred_fallthru
        _
      %p548 = scmp.le.s32.totalorder 1, %s30
      %p549 = scmp.lt.s32.totalorder %s30, 3
      %p550 = pnand %p548, %p549
      %p551 = pneg %p550
      // Predicated region
      $region89: #{gnnml1_forward.1} parent=5 // pred_check
        _
      $region90: #{gnnml1_forward.1} parent=5 // pred_check_branch
        %553 = sbr.rel (%p550) target = $region92
      $region91: #{gnnml1_forward.1} parent=5 // pred_region
        %s554 = ssub.s32 %s30, 1
        %s555 = sand.u32 %s69, 1
        %s556 = scalar_lea.sflag [#allocation3], %s555
        %s557 = sand.u32 %s69, 1
        %s558 = smul.addr %s557, 128
        %s559 = scalar_lea.vmem [#allocation2], %s558
        // Predicated region
        $region93: #{gnnml1_forward.1} parent=91 // pred_check
          %p560 = pneg %p82
        $region94: #{gnnml1_forward.1} parent=91 // pred_check_branch
          %562 = sbr.rel (%p560) target = $region96
        $region95: #{gnnml1_forward.1} parent=91 // pred_region
          %563 = dma.done %s556, 2048
        $region96: #{gnnml1_forward.1} parent=91 // pred_fallthru
          _
        %p564 = scmp.lt.s32.totalorder %s35, 1
        %s565 = scalar_select %p564, %s35, 1
        %s566 = smul.addr %s565, 16
        %s567 = smul.addr %s566, 8
        %s568 = scalar_lea.vmem %s0, %s567
        %p569 = pneg %p56
        %p570 = pneg %p53
        %s571 = sand.u32 %s69, 1
        %s572 = scalar_lea.sflag [#allocation3], %s571
        %s573 = sand.u32 %s69, 1
        %s574 = smul.addr %s573, 128
        %s575 = scalar_lea.vmem [#allocation2], %s574
        %p576 = pneg %p82
        %p577 = pneg %p79
        %p578 = scmp.lt.s32.totalorder %s35, 1
        %s579 = scalar_select %p578, %s35, 1
        %s580 = scalar_lea.vmem %s2, %s579
        %p581 = pneg %p108
        %p582 = pneg %p105
        %p583 = pneg %p129
        %p584 = pneg %p126
        %p585 = pneg %p150
        %p586 = pneg %p147
        %p587 = pneg %p171
        %p588 = pneg %p168
        %p589 = pneg %p192
        %p590 = pneg %p189
        %p591 = pneg %p213
        %p592 = pneg %p210
        %p593 = pneg %p234
        %p594 = pneg %p231
        %p595 = pneg %p255
        %p596 = pneg %p252
        %p597 = pneg %p276
        %p598 = pneg %p273
        %p599 = pneg %p297
        %p600 = pneg %p294
        %p601 = pneg %p318
        %p602 = pneg %p315
        %p603 = pneg %p339
        %p604 = pneg %p336
        %p605 = pneg %p360
        %p606 = pneg %p357
        %p607 = pneg %p381
        %p608 = pneg %p378
        %p609 = pneg %p402
        %p610 = pneg %p399
        %p611 = pneg %p423
        %p612 = pneg %p420
        %p613 = pneg %p449
        %p614 = pneg %p446
        %s615 = sand.u32 %s436, 1
        %s616 = scalar_lea.sflag [#allocation4], %s615
        %s617 = sand.u32 %s436, 1
        %s618 = scalar_lea.vmem [#allocation5], %s617
        %p619 = scmp.lt.s32.totalorder %s35, 1
        %s620 = scalar_select %p619, %s35, 1
        %s621 = smul.addr %s620, 16
        %s622 = smul.addr %s621, 8
        %s623 = scalar_lea.vmem %s0, %s622
        %p624 = scmp.lt.s32.totalorder %s35, 1
        %s625 = scalar_select %p624, %s35, 1
        %s626 = scalar_lea.vmem %s2, %s625
        %v627 = vld [vmem:[%s559] sm:$0xff]
        %v628 = vld [vmem:[%s559 + $0x8] sm:$0xff]
        %v629 = vld [vmem:[%s559 + $0x10] sm:$0xff]
        %v630 = vld [vmem:[%s559 + $0x18] sm:$0xff]
        %v631 = vld [vmem:[%s559 + $0x20] sm:$0xff]
        %v632 = vld [vmem:[%s559 + $0x28] sm:$0xff]
        %v633 = vld [vmem:[%s559 + $0x30] sm:$0xff]
        %v634 = vld [vmem:[%s559 + $0x38] sm:$0xff]
        %v635 = vld [vmem:[%s559 + $0x40] sm:$0xff]
        %v636 = vld [vmem:[%s559 + $0x48] sm:$0xff]
        %v637 = vld [vmem:[%s559 + $0x50] sm:$0xff]
        %v638 = vld [vmem:[%s559 + $0x58] sm:$0xff]
        %v639 = vld [vmem:[%s559 + $0x60] sm:$0xff]
        %v640 = vld [vmem:[%s559 + $0x68] sm:$0xff]
        %v641 = vld [vmem:[%s559 + $0x70] sm:$0xff]
        %v642 = vld [vmem:[%s559 + $0x78] sm:$0xff]
        %v643 = vld [vmem:[%s623] sm:$0xff]
        %v644 = vld [vmem:[%s623 + $0x8] sm:$0xff]
        %v645 = vld [vmem:[%s623 + $0x10] sm:$0xff]
        %v646 = vld [vmem:[%s623 + $0x18] sm:$0xff]
        %v647 = vld [vmem:[%s623 + $0x20] sm:$0xff]
        %v648 = vld [vmem:[%s623 + $0x28] sm:$0xff]
        %v649 = vld [vmem:[%s623 + $0x30] sm:$0xff]
        %v650 = vld [vmem:[%s623 + $0x38] sm:$0xff]
        %v651 = vld [vmem:[%s623 + $0x40] sm:$0xff]
        %v652 = vld [vmem:[%s623 + $0x48] sm:$0xff]
        %v653 = vld [vmem:[%s623 + $0x50] sm:$0xff]
        %v654 = vld [vmem:[%s623 + $0x58] sm:$0xff]
        %v655 = vld [vmem:[%s623 + $0x60] sm:$0xff]
        %v656 = vld [vmem:[%s623 + $0x68] sm:$0xff]
        %v657 = vld [vmem:[%s623 + $0x70] sm:$0xff]
        %v658 = vld [vmem:[%s623 + $0x78] sm:$0xff]
        %v659 = vld [vmem:[%s3] sm:$0xff]
        %v660 = vld [vmem:[%s3 + $0x8] sm:$0xff]
        %v661 = vld [vmem:[%s4] sm:$0x3]
        %v663 = vlaneseq
        %v664 = vshrl.u32 %v663, 7
        %v665 = vsub.s32 0, %v664
        %v666 = vrot.slane %v661, %v665
        %v667 = vlaneseq
        %v668 = vshrl.u32 %v667, 7
        %v669 = vsub.s32 1, %v668
        %v670 = vrot.slane %v661, %v669
        %vm673 = vcmask 64512
        %v675 = vsel %vm673, %v643, 0
        %v678 = vsel %vm673, %v644, 0
        %v681 = vsel %vm673, %v645, 0
        %v684 = vsel %vm673, %v646, 0
        %v687 = vsel %vm673, %v647, 0
        %v690 = vsel %vm673, %v648, 0
        %v693 = vsel %vm673, %v649, 0
        %v696 = vsel %vm673, %v650, 0
        %v699 = vsel %vm673, %v651, 0
        %v702 = vsel %vm673, %v652, 0
        %v705 = vsel %vm673, %v653, 0
        %v708 = vsel %vm673, %v654, 0
        %v711 = vsel %vm673, %v655, 0
        %v714 = vsel %vm673, %v656, 0
        %v717 = vsel %vm673, %v657, 0
        %v720 = vsel %vm673, %v658, 0
        %722 = vmatprep.subr.mxu0 %v660
        %723 = vmatpush1.msra.mxu0 %v659
        %724 = vmatprep.subr.mxu0 0.0
        %725 = vmatpush1.msra.mxu0 0.0
        %726 = vmatprep.subr.mxu0 0.0
        %727 = vmatpush1.msra.mxu0 0.0
        %728 = vmatprep.subr.mxu0 0.0
        %729 = vmatpush1.msra.mxu0 0.0
        %730 = vmatprep.subr.mxu0 0.0
        %731 = vmatpush1.msra.mxu0 0.0
        %732 = vmatprep.subr.mxu0 0.0
        %733 = vmatpush1.msra.mxu0 0.0
        %734 = vmatprep.subr.mxu0 0.0
        %735 = vmatpush1.msra.mxu0 0.0
        %736 = vmatprep.subr.mxu0 0.0
        %737 = vmatpush1.msra.mxu0 0.0
        %738 = vmatprep.subr.mxu0 0.0
        %739 = vmatpush1.msra.mxu0 0.0
        %740 = vmatprep.subr.mxu0 0.0
        %741 = vmatpush1.msra.mxu0 0.0
        %742 = vmatprep.subr.mxu0 0.0
        %743 = vmatpush1.msra.mxu0 0.0
        %744 = vmatprep.subr.mxu0 0.0
        %745 = vmatpush1.msra.mxu0 0.0
        %746 = vmatprep.subr.mxu0 0.0
        %747 = vmatpush1.msra.mxu0 0.0
        %748 = vmatprep.subr.mxu0 0.0
        %749 = vmatpush1.msra.mxu0 0.0
        %750 = vmatprep.subr.mxu0 0.0
        %751 = vmatpush1.msra.mxu0 0.0
        %752 = vmatprep.subr.mxu0 0.0
        %753 = vmatpush1.msra.mxu0 0.0
        %754 = vmatprep.subr.mxu0 0.0
        %755 = vmatpush1.msra.mxu0 0.0
        %756 = vmatprep.subr.mxu0 0.0
        %757 = vmatpush1.msra.mxu0 0.0
        %758 = vmatprep.subr.mxu0 0.0
        %759 = vmatpush1.msra.mxu0 0.0
        %760 = vmatprep.subr.mxu0 0.0
        %761 = vmatpush1.msra.mxu0 0.0
        %762 = vmatprep.subr.mxu0 0.0
        %763 = vmatpush1.msra.mxu0 0.0
        %764 = vmatprep.subr.mxu0 0.0
        %765 = vmatpush1.msra.mxu0 0.0
        %766 = vmatprep.subr.mxu0 0.0
        %767 = vmatpush1.msra.mxu0 0.0
        %768 = vmatprep.subr.mxu0 0.0
        %769 = vmatpush1.msra.mxu0 0.0
        %770 = vmatprep.subr.mxu0 0.0
        %771 = vmatpush1.msra.mxu0 0.0
        %772 = vmatprep.subr.mxu0 0.0
        %773 = vmatpush1.msra.mxu0 0.0
        %774 = vmatprep.subr.mxu0 0.0
        %775 = vmatpush1.msra.mxu0 0.0
        %776 = vmatprep.subr.mxu0 0.0
        %777 = vmatpush1.msra.mxu0 0.0
        %778 = vmatprep.subr.mxu0 0.0
        %779 = vmatpush1.msra.mxu0 0.0
        %780 = vmatprep.subr.mxu0 0.0
        %781 = vmatpush1.msra.mxu0 0.0
        %782 = vmatprep.subr.mxu0 0.0
        %783 = vmatpush1.msra.mxu0 0.0
        %784 = vmatprep.subr.mxu0 0.0
        %785 = vmatpush1.msra.mxu0 0.0
        %786 = vmatprep.mubr.f32.mxu0 0.0
        %787 = vmatmul.mubr.f32.gmra.mrb[0].mxu0 %v675
        %v788 = vpop.f32.mrb[0].mxu0
        %v789 = vadd.f32 %v666, %v788
        %v790 = vpop.f32.mrb[0].mxu0
        %v791 = vadd.f32 %v670, %v790
        %792 = vmatprep.mubr.f32.mxu0 0.0
        %793 = vmatmul.mubr.f32.gmra.mrb[0].mxu0 %v678
        %v794 = vpop.f32.mrb[0].mxu0
        %v795 = vadd.f32 %v666, %v794
        %v796 = vpop.f32.mrb[0].mxu0
        %v797 = vadd.f32 %v670, %v796
        %798 = vmatprep.mubr.f32.mxu0 0.0
        %799 = vmatmul.mubr.f32.gmra.mrb[0].mxu0 %v681
        %v800 = vpop.f32.mrb[0].mxu0
        %v801 = vadd.f32 %v666, %v800
        %v802 = vpop.f32.mrb[0].mxu0
        %v803 = vadd.f32 %v670, %v802
        %804 = vmatprep.mubr.f32.mxu0 0.0
        %805 = vmatmul.mubr.f32.gmra.mrb[0].mxu0 %v684
        %v806 = vpop.f32.mrb[0].mxu0
        %v807 = vadd.f32 %v666, %v806
        %v808 = vpop.f32.mrb[0].mxu0
        %v809 = vadd.f32 %v670, %v808
        %810 = vmatprep.mubr.f32.mxu0 0.0
        %811 = vmatmul.mubr.f32.gmra.mrb[0].mxu0 %v687
        %v812 = vpop.f32.mrb[0].mxu0
        %v813 = vadd.f32 %v666, %v812
        %v814 = vpop.f32.mrb[0].mxu0
        %v815 = vadd.f32 %v670, %v814
        %816 = vmatprep.mubr.f32.mxu0 0.0
        %817 = vmatmul.mubr.f32.gmra.mrb[0].mxu0 %v690
        %v818 = vpop.f32.mrb[0].mxu0
        %v819 = vadd.f32 %v666, %v818
        %v820 = vpop.f32.mrb[0].mxu0
        %v821 = vadd.f32 %v670, %v820
        %822 = vmatprep.mubr.f32.mxu0 0.0
        %823 = vmatmul.mubr.f32.gmra.mrb[0].mxu0 %v693
        %v824 = vpop.f32.mrb[0].mxu0
        %v825 = vadd.f32 %v666, %v824
        %v826 = vpop.f32.mrb[0].mxu0
        %v827 = vadd.f32 %v670, %v826
        %828 = vmatprep.mubr.f32.mxu0 0.0
        %829 = vmatmul.mubr.f32.gmra.mrb[0].mxu0 %v696
        %v830 = vpop.f32.mrb[0].mxu0
        %v831 = vadd.f32 %v666, %v830
        %v832 = vpop.f32.mrb[0].mxu0
        %v833 = vadd.f32 %v670, %v832
        %834 = vmatprep.mubr.f32.mxu0 0.0
        %835 = vmatmul.mubr.f32.gmra.mrb[0].mxu0 %v699
        %v836 = vpop.f32.mrb[0].mxu0
        %v837 = vadd.f32 %v666, %v836
        %v838 = vpop.f32.mrb[0].mxu0
        %v839 = vadd.f32 %v670, %v838
        %840 = vmatprep.mubr.f32.mxu0 0.0
        %841 = vmatmul.mubr.f32.gmra.mrb[0].mxu0 %v702
        %v842 = vpop.f32.mrb[0].mxu0
        %v843 = vadd.f32 %v666, %v842
        %v844 = vpop.f32.mrb[0].mxu0
        %v845 = vadd.f32 %v670, %v844
        %846 = vmatprep.mubr.f32.mxu0 0.0
        %847 = vmatmul.mubr.f32.gmra.mrb[0].mxu0 %v705
        %v848 = vpop.f32.mrb[0].mxu0
        %v849 = vadd.f32 %v666, %v848
        %v850 = vpop.f32.mrb[0].mxu0
        %v851 = vadd.f32 %v670, %v850
        %852 = vmatprep.mubr.f32.mxu0 0.0
        %853 = vmatmul.mubr.f32.gmra.mrb[0].mxu0 %v708
        %v854 = vpop.f32.mrb[0].mxu0
        %v855 = vadd.f32 %v666, %v854
        %v856 = vpop.f32.mrb[0].mxu0
        %v857 = vadd.f32 %v670, %v856
        %858 = vmatprep.mubr.f32.mxu0 0.0
        %859 = vmatmul.mubr.f32.gmra.mrb[0].mxu0 %v711
        %v860 = vpop.f32.mrb[0].mxu0
        %v861 = vadd.f32 %v666, %v860
        %v862 = vpop.f32.mrb[0].mxu0
        %v863 = vadd.f32 %v670, %v862
        %864 = vmatprep.mubr.f32.mxu0 0.0
        %865 = vmatmul.mubr.f32.gmra.mrb[0].mxu0 %v714
        %v866 = vpop.f32.mrb[0].mxu0
        %v867 = vadd.f32 %v666, %v866
        %v868 = vpop.f32.mrb[0].mxu0
        %v869 = vadd.f32 %v670, %v868
        %870 = vmatprep.mubr.f32.mxu0 0.0
        %871 = vmatmul.mubr.f32.gmra.mrb[0].mxu0 %v717
        %v872 = vpop.f32.mrb[0].mxu0
        %v873 = vadd.f32 %v666, %v872
        %v874 = vpop.f32.mrb[0].mxu0
        %v875 = vadd.f32 %v670, %v874
        %876 = vmatprep.mubr.f32.mxu0 0.0
        %877 = vmatmul.mubr.f32.gmra.mrb[0].mxu0 %v720
        %v878 = vpop.f32.mrb[0].mxu0
        %v879 = vadd.f32 %v666, %v878
        %v880 = vpop.f32.mrb[0].mxu0
        %v881 = vadd.f32 %v670, %v880
        %882 = vdwg.mxu0
        %v883 = vld [vmem:[%s5] sm:$0x1]
        %v885 = vlaneseq
        %v886 = vshrl.u32 %v885, 7
        %v887 = vsub.s32 0, %v886
        %v888 = vrot.slane %v883, %v887
        %906 = vrot.lane.b32.xlu0 %v789, 64
        %v907 = vpop.permute.xlu0 %906
        %908 = vrot.lane.b32.xlu0 %v795, 64
        %v909 = vpop.permute.xlu0 %908
        %910 = vrot.lane.b32.xlu0 %v801, 64
        %v911 = vpop.permute.xlu0 %910
        %912 = vrot.lane.b32.xlu0 %v807, 64
        %v913 = vpop.permute.xlu0 %912
        %914 = vrot.lane.b32.xlu0 %v813, 64
        %v915 = vpop.permute.xlu0 %914
        %916 = vrot.lane.b32.xlu0 %v819, 64
        %v917 = vpop.permute.xlu0 %916
        %918 = vrot.lane.b32.xlu0 %v825, 64
        %v919 = vpop.permute.xlu0 %918
        %920 = vrot.lane.b32.xlu0 %v831, 64
        %v921 = vpop.permute.xlu0 %920
        %922 = vrot.lane.b32.xlu0 %v837, 64
        %v923 = vpop.permute.xlu0 %922
        %924 = vrot.lane.b32.xlu0 %v843, 64
        %v925 = vpop.permute.xlu0 %924
        %926 = vrot.lane.b32.xlu0 %v849, 64
        %v927 = vpop.permute.xlu0 %926
        %928 = vrot.lane.b32.xlu0 %v855, 64
        %v929 = vpop.permute.xlu0 %928
        %930 = vrot.lane.b32.xlu0 %v861, 64
        %v931 = vpop.permute.xlu0 %930
        %932 = vrot.lane.b32.xlu0 %v867, 64
        %v933 = vpop.permute.xlu0 %932
        %934 = vrot.lane.b32.xlu0 %v873, 64
        %v935 = vpop.permute.xlu0 %934
        %936 = vrot.lane.b32.xlu0 %v879, 64
        %v937 = vpop.permute.xlu0 %936
        %954 = vmatprep.subr.mxu0 0.0
        %955 = vmatpush1.msra.mxu0 %v907
        %956 = vmatprep.subr.mxu0 0.0
        %957 = vmatpush1.msra.mxu0 %v909
        %958 = vmatprep.subr.mxu0 0.0
        %959 = vmatpush1.msra.mxu0 %v911
        %960 = vmatprep.subr.mxu0 0.0
        %961 = vmatpush1.msra.mxu0 %v913
        %962 = vmatprep.subr.mxu0 0.0
        %963 = vmatpush1.msra.mxu0 %v915
        %964 = vmatprep.subr.mxu0 0.0
        %965 = vmatpush1.msra.mxu0 %v917
        %966 = vmatprep.subr.mxu0 0.0
        %967 = vmatpush1.msra.mxu0 %v919
        %968 = vmatprep.subr.mxu0 0.0
        %969 = vmatpush1.msra.mxu0 %v921
        %970 = vmatprep.subr.mxu0 0.0
        %971 = vmatpush1.msra.mxu0 %v923
        %972 = vmatprep.subr.mxu0 0.0
        %973 = vmatpush1.msra.mxu0 %v925
        %974 = vmatprep.subr.mxu0 0.0
        %975 = vmatpush1.msra.mxu0 %v927
        %976 = vmatprep.subr.mxu0 0.0
        %977 = vmatpush1.msra.mxu0 %v929
        %978 = vmatprep.subr.mxu0 0.0
        %979 = vmatpush1.msra.mxu0 %v931
        %980 = vmatprep.subr.mxu0 0.0
        %981 = vmatpush1.msra.mxu0 %v933
        %982 = vmatprep.subr.mxu0 0.0
        %983 = vmatpush1.msra.mxu0 %v935
        %984 = vmatprep.subr.mxu0 0.0
        %985 = vmatpush1.msra.mxu0 %v937
        %986 = vmatprep.subr.mxu0 0.0
        %987 = vmatpush1.msra.mxu0 0.0
        %988 = vmatprep.subr.mxu0 0.0
        %989 = vmatpush1.msra.mxu0 0.0
        %990 = vmatprep.subr.mxu0 0.0
        %991 = vmatpush1.msra.mxu0 0.0
        %992 = vmatprep.subr.mxu0 0.0
        %993 = vmatpush1.msra.mxu0 0.0
        %994 = vmatprep.subr.mxu0 0.0
        %995 = vmatpush1.msra.mxu0 0.0
        %996 = vmatprep.subr.mxu0 0.0
        %997 = vmatpush1.msra.mxu0 0.0
        %998 = vmatprep.subr.mxu0 0.0
        %999 = vmatpush1.msra.mxu0 0.0
        %1000 = vmatprep.subr.mxu0 0.0
        %1001 = vmatpush1.msra.mxu0 0.0
        %1002 = vmatprep.subr.mxu0 0.0
        %1003 = vmatpush1.msra.mxu0 0.0
        %1004 = vmatprep.subr.mxu0 0.0
        %1005 = vmatpush1.msra.mxu0 0.0
        %1006 = vmatprep.subr.mxu0 0.0
        %1007 = vmatpush1.msra.mxu0 0.0
        %1008 = vmatprep.subr.mxu0 0.0
        %1009 = vmatpush1.msra.mxu0 0.0
        %1010 = vmatprep.subr.mxu0 0.0
        %1011 = vmatpush1.msra.mxu0 0.0
        %1012 = vmatprep.subr.mxu0 0.0
        %1013 = vmatpush1.msra.mxu0 0.0
        %1014 = vmatprep.subr.mxu0 0.0
        %1015 = vmatpush1.msra.mxu0 0.0
        %1016 = vmatprep.subr.mxu0 0.0
        %1017 = vmatpush1.msra.mxu0 0.0
        %1018 = vmatprep.mubr.f32.mxu0 0.0
        %1019 = vmatmul.mubr.f32.gmra.mrb[0].mxu0 %v627
        %v1020 = vpop.f32.mrb[0].mxu0
        %v1021 = vadd.f32 %v888, %v1020
        %v1022 = vpop.f32.mrb[0].mxu0
        %1023 = vmatprep.mubr.f32.mxu0 0.0
        %1024 = vmatmul.mubr.f32.gmra.mrb[0].mxu0 %v628
        %v1025 = vpop.f32.mrb[0].mxu0
        %v1026 = vadd.f32 %v888, %v1025
        %v1027 = vpop.f32.mrb[0].mxu0
        %1028 = vmatprep.mubr.f32.mxu0 0.0
        %1029 = vmatmul.mubr.f32.gmra.mrb[0].mxu0 %v629
        %v1030 = vpop.f32.mrb[0].mxu0
        %v1031 = vadd.f32 %v888, %v1030
        %v1032 = vpop.f32.mrb[0].mxu0
        %1033 = vmatprep.mubr.f32.mxu0 0.0
        %1034 = vmatmul.mubr.f32.gmra.mrb[0].mxu0 %v630
        %v1035 = vpop.f32.mrb[0].mxu0
        %v1036 = vadd.f32 %v888, %v1035
        %v1037 = vpop.f32.mrb[0].mxu0
        %1038 = vmatprep.mubr.f32.mxu0 0.0
        %1039 = vmatmul.mubr.f32.gmra.mrb[0].mxu0 %v631
        %v1040 = vpop.f32.mrb[0].mxu0
        %v1041 = vadd.f32 %v888, %v1040
        %v1042 = vpop.f32.mrb[0].mxu0
        %1043 = vmatprep.mubr.f32.mxu0 0.0
        %1044 = vmatmul.mubr.f32.gmra.mrb[0].mxu0 %v632
        %v1045 = vpop.f32.mrb[0].mxu0
        %v1046 = vadd.f32 %v888, %v1045
        %v1047 = vpop.f32.mrb[0].mxu0
        %1048 = vmatprep.mubr.f32.mxu0 0.0
        %1049 = vmatmul.mubr.f32.gmra.mrb[0].mxu0 %v633
        %v1050 = vpop.f32.mrb[0].mxu0
        %v1051 = vadd.f32 %v888, %v1050
        %v1052 = vpop.f32.mrb[0].mxu0
        %1053 = vmatprep.mubr.f32.mxu0 0.0
        %1054 = vmatmul.mubr.f32.gmra.mrb[0].mxu0 %v634
        %v1055 = vpop.f32.mrb[0].mxu0
        %v1056 = vadd.f32 %v888, %v1055
        %v1057 = vpop.f32.mrb[0].mxu0
        %1058 = vmatprep.mubr.f32.mxu0 0.0
        %1059 = vmatmul.mubr.f32.gmra.mrb[0].mxu0 %v635
        %v1060 = vpop.f32.mrb[0].mxu0
        %v1061 = vadd.f32 %v888, %v1060
        %v1062 = vpop.f32.mrb[0].mxu0
        %1063 = vmatprep.mubr.f32.mxu0 0.0
        %1064 = vmatmul.mubr.f32.gmra.mrb[0].mxu0 %v636
        %v1065 = vpop.f32.mrb[0].mxu0
        %v1066 = vadd.f32 %v888, %v1065
        %v1067 = vpop.f32.mrb[0].mxu0
        %1068 = vmatprep.mubr.f32.mxu0 0.0
        %1069 = vmatmul.mubr.f32.gmra.mrb[0].mxu0 %v637
        %v1070 = vpop.f32.mrb[0].mxu0
        %v1071 = vadd.f32 %v888, %v1070
        %v1072 = vpop.f32.mrb[0].mxu0
        %1073 = vmatprep.mubr.f32.mxu0 0.0
        %1074 = vmatmul.mubr.f32.gmra.mrb[0].mxu0 %v638
        %v1075 = vpop.f32.mrb[0].mxu0
        %v1076 = vadd.f32 %v888, %v1075
        %v1077 = vpop.f32.mrb[0].mxu0
        %1078 = vmatprep.mubr.f32.mxu0 0.0
        %1079 = vmatmul.mubr.f32.gmra.mrb[0].mxu0 %v639
        %v1080 = vpop.f32.mrb[0].mxu0
        %v1081 = vadd.f32 %v888, %v1080
        %v1082 = vpop.f32.mrb[0].mxu0
        %1083 = vmatprep.mubr.f32.mxu0 0.0
        %1084 = vmatmul.mubr.f32.gmra.mrb[0].mxu0 %v640
        %v1085 = vpop.f32.mrb[0].mxu0
        %v1086 = vadd.f32 %v888, %v1085
        %v1087 = vpop.f32.mrb[0].mxu0
        %1088 = vmatprep.mubr.f32.mxu0 0.0
        %1089 = vmatmul.mubr.f32.gmra.mrb[0].mxu0 %v641
        %v1090 = vpop.f32.mrb[0].mxu0
        %v1091 = vadd.f32 %v888, %v1090
        %v1092 = vpop.f32.mrb[0].mxu0
        %1093 = vmatprep.mubr.f32.mxu0 0.0
        %1094 = vmatmul.mubr.f32.gmra.mrb[0].mxu0 %v642
        %v1095 = vpop.f32.mrb[0].mxu0
        %v1096 = vadd.f32 %v888, %v1095
        %v1097 = vpop.f32.mrb[0].mxu0
        %1098 = vdwg.mxu0
        %v1099 = vadd.f32 %v789, %v1021
        %v1100 = vadd.f32 %v795, %v1026
        %v1101 = vadd.f32 %v801, %v1031
        %v1102 = vadd.f32 %v807, %v1036
        %v1103 = vadd.f32 %v813, %v1041
        %v1104 = vadd.f32 %v819, %v1046
        %v1105 = vadd.f32 %v825, %v1051
        %v1106 = vadd.f32 %v831, %v1056
        %v1107 = vadd.f32 %v837, %v1061
        %v1108 = vadd.f32 %v843, %v1066
        %v1109 = vadd.f32 %v849, %v1071
        %v1110 = vadd.f32 %v855, %v1076
        %v1111 = vadd.f32 %v861, %v1081
        %v1112 = vadd.f32 %v867, %v1086
        %v1113 = vadd.f32 %v873, %v1091
        %v1114 = vadd.f32 %v879, %v1096
        %1131 = vrot.lane.b32.xlu0 %v791, 64
        %v1132 = vpop.permute.xlu0 %1131
        %1133 = vrot.lane.b32.xlu0 %v797, 64
        %v1134 = vpop.permute.xlu0 %1133
        %1135 = vrot.lane.b32.xlu0 %v803, 64
        %v1136 = vpop.permute.xlu0 %1135
        %1137 = vrot.lane.b32.xlu0 %v809, 64
        %v1138 = vpop.permute.xlu0 %1137
        %1139 = vrot.lane.b32.xlu0 %v815, 64
        %v1140 = vpop.permute.xlu0 %1139
        %1141 = vrot.lane.b32.xlu0 %v821, 64
        %v1142 = vpop.permute.xlu0 %1141
        %1143 = vrot.lane.b32.xlu0 %v827, 64
        %v1144 = vpop.permute.xlu0 %1143
        %1145 = vrot.lane.b32.xlu0 %v833, 64
        %v1146 = vpop.permute.xlu0 %1145
        %1147 = vrot.lane.b32.xlu0 %v839, 64
        %v1148 = vpop.permute.xlu0 %1147
        %1149 = vrot.lane.b32.xlu0 %v845, 64
        %v1150 = vpop.permute.xlu0 %1149
        %1151 = vrot.lane.b32.xlu0 %v851, 64
        %v1152 = vpop.permute.xlu0 %1151
        %1153 = vrot.lane.b32.xlu0 %v857, 64
        %v1154 = vpop.permute.xlu0 %1153
        %1155 = vrot.lane.b32.xlu0 %v863, 64
        %v1156 = vpop.permute.xlu0 %1155
        %1157 = vrot.lane.b32.xlu0 %v869, 64
        %v1158 = vpop.permute.xlu0 %1157
        %1159 = vrot.lane.b32.xlu0 %v875, 64
        %v1160 = vpop.permute.xlu0 %1159
        %1161 = vrot.lane.b32.xlu0 %v881, 64
        %v1162 = vpop.permute.xlu0 %1161
        %v1179 = vmul.f32 %v791, %v1132
        %v1180 = vmul.f32 %v797, %v1134
        %v1181 = vmul.f32 %v803, %v1136
        %v1182 = vmul.f32 %v809, %v1138
        %v1183 = vmul.f32 %v815, %v1140
        %v1184 = vmul.f32 %v821, %v1142
        %v1185 = vmul.f32 %v827, %v1144
        %v1186 = vmul.f32 %v833, %v1146
        %v1187 = vmul.f32 %v839, %v1148
        %v1188 = vmul.f32 %v845, %v1150
        %v1189 = vmul.f32 %v851, %v1152
        %v1190 = vmul.f32 %v857, %v1154
        %v1191 = vmul.f32 %v863, %v1156
        %v1192 = vmul.f32 %v869, %v1158
        %v1193 = vmul.f32 %v875, %v1160
        %v1194 = vmul.f32 %v881, %v1162
        %v1195 = vadd.f32 %v1099, %v1179
        %v1196 = vadd.f32 %v1100, %v1180
        %v1197 = vadd.f32 %v1101, %v1181
        %v1198 = vadd.f32 %v1102, %v1182
        %v1199 = vadd.f32 %v1103, %v1183
        %v1200 = vadd.f32 %v1104, %v1184
        %v1201 = vadd.f32 %v1105, %v1185
        %v1202 = vadd.f32 %v1106, %v1186
        %v1203 = vadd.f32 %v1107, %v1187
        %v1204 = vadd.f32 %v1108, %v1188
        %v1205 = vadd.f32 %v1109, %v1189
        %v1206 = vadd.f32 %v1110, %v1190
        %v1207 = vadd.f32 %v1111, %v1191
        %v1208 = vadd.f32 %v1112, %v1192
        %v1209 = vadd.f32 %v1113, %v1193
        %v1210 = vadd.f32 %v1114, %v1194
        %v1211 = vmax.f32 %v1195, 0.0
        %v1212 = vmax.f32 %v1196, 0.0
        %v1213 = vmax.f32 %v1197, 0.0
        %v1214 = vmax.f32 %v1198, 0.0
        %v1215 = vmax.f32 %v1199, 0.0
        %v1216 = vmax.f32 %v1200, 0.0
        %v1217 = vmax.f32 %v1201, 0.0
        %v1218 = vmax.f32 %v1202, 0.0
        %v1219 = vmax.f32 %v1203, 0.0
        %v1220 = vmax.f32 %v1204, 0.0
        %v1221 = vmax.f32 %v1205, 0.0
        %v1222 = vmax.f32 %v1206, 0.0
        %v1223 = vmax.f32 %v1207, 0.0
        %v1224 = vmax.f32 %v1208, 0.0
        %v1225 = vmax.f32 %v1209, 0.0
        %v1226 = vmax.f32 %v1210, 0.0
        %v1227 = vld [vmem:[%s6] sm:$0xff]
        %v1228 = vld [vmem:[%s6 + $0x8] sm:$0xff]
        %v1229 = vld [vmem:[%s6 + $0x10] sm:$0xff]
        %v1230 = vld [vmem:[%s6 + $0x18] sm:$0xff]
        %v1231 = vld [vmem:[%s6 + $0x20] sm:$0xff]
        %v1232 = vld [vmem:[%s6 + $0x28] sm:$0xff]
        %v1233 = vld [vmem:[%s6 + $0x30] sm:$0xff]
        %v1234 = vld [vmem:[%s6 + $0x38] sm:$0xff]
        %v1235 = vld [vmem:[%s6 + $0x40] sm:$0xff]
        %v1236 = vld [vmem:[%s6 + $0x48] sm:$0xff]
        %v1237 = vld [vmem:[%s6 + $0x50] sm:$0xff]
        %v1238 = vld [vmem:[%s6 + $0x58] sm:$0xff]
        %v1239 = vld [vmem:[%s6 + $0x60] sm:$0xff]
        %v1240 = vld [vmem:[%s6 + $0x68] sm:$0xff]
        %v1241 = vld [vmem:[%s6 + $0x70] sm:$0xff]
        %v1242 = vld [vmem:[%s6 + $0x78] sm:$0xff]
        %v1243 = vld [vmem:[%s7] sm:$0x3]
        %v1245 = vlaneseq
        %v1246 = vshrl.u32 %v1245, 7
        %v1247 = vsub.s32 0, %v1246
        %v1248 = vrot.slane %v1243, %v1247
        %v1249 = vlaneseq
        %v1250 = vshrl.u32 %v1249, 7
        %v1251 = vsub.s32 1, %v1250
        %v1252 = vrot.slane %v1243, %v1251
        %vm1255 = vcmask 523264
        %v1257 = vsel %vm1255, %v1211, 0
        %v1260 = vsel %vm1255, %v1212, 0
        %v1263 = vsel %vm1255, %v1213, 0
        %v1266 = vsel %vm1255, %v1214, 0
        %v1269 = vsel %vm1255, %v1215, 0
        %v1272 = vsel %vm1255, %v1216, 0
        %v1275 = vsel %vm1255, %v1217, 0
        %v1278 = vsel %vm1255, %v1218, 0
        %v1281 = vsel %vm1255, %v1219, 0
        %v1284 = vsel %vm1255, %v1220, 0
        %v1287 = vsel %vm1255, %v1221, 0
        %v1290 = vsel %vm1255, %v1222, 0
        %v1293 = vsel %vm1255, %v1223, 0
        %v1296 = vsel %vm1255, %v1224, 0
        %v1299 = vsel %vm1255, %v1225, 0
        %v1302 = vsel %vm1255, %v1226, 0
        %1304 = vmatprep.subr.mxu0 %v1228
        %1305 = vmatpush1.msra.mxu0 %v1227
        %1306 = vmatprep.subr.mxu0 %v1230
        %1307 = vmatpush1.msra.mxu0 %v1229
        %1308 = vmatprep.subr.mxu0 %v1232
        %1309 = vmatpush1.msra.mxu0 %v1231
        %1310 = vmatprep.subr.mxu0 %v1234
        %1311 = vmatpush1.msra.mxu0 %v1233
        %1312 = vmatprep.subr.mxu0 %v1236
        %1313 = vmatpush1.msra.mxu0 %v1235
        %1314 = vmatprep.subr.mxu0 %v1238
        %1315 = vmatpush1.msra.mxu0 %v1237
        %1316 = vmatprep.subr.mxu0 %v1240
        %1317 = vmatpush1.msra.mxu0 %v1239
        %1318 = vmatprep.subr.mxu0 %v1242
        %1319 = vmatpush1.msra.mxu0 %v1241
        %1320 = vmatprep.subr.mxu0 0.0
        %1321 = vmatpush1.msra.mxu0 0.0
        %1322 = vmatprep.subr.mxu0 0.0
        %1323 = vmatpush1.msra.mxu0 0.0
        %1324 = vmatprep.subr.mxu0 0.0
        %1325 = vmatpush1.msra.mxu0 0.0
        %1326 = vmatprep.subr.mxu0 0.0
        %1327 = vmatpush1.msra.mxu0 0.0
        %1328 = vmatprep.subr.mxu0 0.0
        %1329 = vmatpush1.msra.mxu0 0.0
        %1330 = vmatprep.subr.mxu0 0.0
        %1331 = vmatpush1.msra.mxu0 0.0
        %1332 = vmatprep.subr.mxu0 0.0
        %1333 = vmatpush1.msra.mxu0 0.0
        %1334 = vmatprep.subr.mxu0 0.0
        %1335 = vmatpush1.msra.mxu0 0.0
        %1336 = vmatprep.subr.mxu0 0.0
        %1337 = vmatpush1.msra.mxu0 0.0
        %1338 = vmatprep.subr.mxu0 0.0
        %1339 = vmatpush1.msra.mxu0 0.0
        %1340 = vmatprep.subr.mxu0 0.0
        %1341 = vmatpush1.msra.mxu0 0.0
        %1342 = vmatprep.subr.mxu0 0.0
        %1343 = vmatpush1.msra.mxu0 0.0
        %1344 = vmatprep.subr.mxu0 0.0
        %1345 = vmatpush1.msra.mxu0 0.0
        %1346 = vmatprep.subr.mxu0 0.0
        %1347 = vmatpush1.msra.mxu0 0.0
        %1348 = vmatprep.subr.mxu0 0.0
        %1349 = vmatpush1.msra.mxu0 0.0
        %1350 = vmatprep.subr.mxu0 0.0
        %1351 = vmatpush1.msra.mxu0 0.0
        %1352 = vmatprep.subr.mxu0 0.0
        %1353 = vmatpush1.msra.mxu0 0.0
        %1354 = vmatprep.subr.mxu0 0.0
        %1355 = vmatpush1.msra.mxu0 0.0
        %1356 = vmatprep.subr.mxu0 0.0
        %1357 = vmatpush1.msra.mxu0 0.0
        %1358 = vmatprep.subr.mxu0 0.0
        %1359 = vmatpush1.msra.mxu0 0.0
        %1360 = vmatprep.subr.mxu0 0.0
        %1361 = vmatpush1.msra.mxu0 0.0
        %1362 = vmatprep.subr.mxu0 0.0
        %1363 = vmatpush1.msra.mxu0 0.0
        %1364 = vmatprep.subr.mxu0 0.0
        %1365 = vmatpush1.msra.mxu0 0.0
        %1366 = vmatprep.subr.mxu0 0.0
        %1367 = vmatpush1.msra.mxu0 0.0
        %1368 = vmatprep.mubr.f32.mxu0 0.0
        %1369 = vmatmul.mubr.f32.gmra.mrb[0].mxu0 %v1257
        %v1370 = vpop.f32.mrb[0].mxu0
        %v1371 = vadd.f32 %v1248, %v1370
        %v1372 = vpop.f32.mrb[0].mxu0
        %v1373 = vadd.f32 %v1252, %v1372
        %1374 = vmatprep.mubr.f32.mxu0 0.0
        %1375 = vmatmul.mubr.f32.gmra.mrb[0].mxu0 %v1260
        %v1376 = vpop.f32.mrb[0].mxu0
        %v1377 = vadd.f32 %v1248, %v1376
        %v1378 = vpop.f32.mrb[0].mxu0
        %v1379 = vadd.f32 %v1252, %v1378
        %1380 = vmatprep.mubr.f32.mxu0 0.0
        %1381 = vmatmul.mubr.f32.gmra.mrb[0].mxu0 %v1263
        %v1382 = vpop.f32.mrb[0].mxu0
        %v1383 = vadd.f32 %v1248, %v1382
        %v1384 = vpop.f32.mrb[0].mxu0
        %v1385 = vadd.f32 %v1252, %v1384
        %1386 = vmatprep.mubr.f32.mxu0 0.0
        %1387 = vmatmul.mubr.f32.gmra.mrb[0].mxu0 %v1266
        %v1388 = vpop.f32.mrb[0].mxu0
        %v1389 = vadd.f32 %v1248, %v1388
        %v1390 = vpop.f32.mrb[0].mxu0
        %v1391 = vadd.f32 %v1252, %v1390
        %1392 = vmatprep.mubr.f32.mxu0 0.0
        %1393 = vmatmul.mubr.f32.gmra.mrb[0].mxu0 %v1269
        %v1394 = vpop.f32.mrb[0].mxu0
        %v1395 = vadd.f32 %v1248, %v1394
        %v1396 = vpop.f32.mrb[0].mxu0
        %v1397 = vadd.f32 %v1252, %v1396
        %1398 = vmatprep.mubr.f32.mxu0 0.0
        %1399 = vmatmul.mubr.f32.gmra.mrb[0].mxu0 %v1272
        %v1400 = vpop.f32.mrb[0].mxu0
        %v1401 = vadd.f32 %v1248, %v1400
        %v1402 = vpop.f32.mrb[0].mxu0
        %v1403 = vadd.f32 %v1252, %v1402
        %1404 = vmatprep.mubr.f32.mxu0 0.0
        %1405 = vmatmul.mubr.f32.gmra.mrb[0].mxu0 %v1275
        %v1406 = vpop.f32.mrb[0].mxu0
        %v1407 = vadd.f32 %v1248, %v1406
        %v1408 = vpop.f32.mrb[0].mxu0
        %v1409 = vadd.f32 %v1252, %v1408
        %1410 = vmatprep.mubr.f32.mxu0 0.0
        %1411 = vmatmul.mubr.f32.gmra.mrb[0].mxu0 %v1278
        %v1412 = vpop.f32.mrb[0].mxu0
        %v1413 = vadd.f32 %v1248, %v1412
        %v1414 = vpop.f32.mrb[0].mxu0
        %v1415 = vadd.f32 %v1252, %v1414
        %1416 = vmatprep.mubr.f32.mxu0 0.0
        %1417 = vmatmul.mubr.f32.gmra.mrb[0].mxu0 %v1281
        %v1418 = vpop.f32.mrb[0].mxu0
        %v1419 = vadd.f32 %v1248, %v1418
        %v1420 = vpop.f32.mrb[0].mxu0
        %v1421 = vadd.f32 %v1252, %v1420
        %1422 = vmatprep.mubr.f32.mxu0 0.0
        %1423 = vmatmul.mubr.f32.gmra.mrb[0].mxu0 %v1284
        %v1424 = vpop.f32.mrb[0].mxu0
        %v1425 = vadd.f32 %v1248, %v1424
        %v1426 = vpop.f32.mrb[0].mxu0
        %v1427 = vadd.f32 %v1252, %v1426
        %1428 = vmatprep.mubr.f32.mxu0 0.0
        %1429 = vmatmul.mubr.f32.gmra.mrb[0].mxu0 %v1287
        %v1430 = vpop.f32.mrb[0].mxu0
        %v1431 = vadd.f32 %v1248, %v1430
        %v1432 = vpop.f32.mrb[0].mxu0
        %v1433 = vadd.f32 %v1252, %v1432
        %1434 = vmatprep.mubr.f32.mxu0 0.0
        %1435 = vmatmul.mubr.f32.gmra.mrb[0].mxu0 %v1290
        %v1436 = vpop.f32.mrb[0].mxu0
        %v1437 = vadd.f32 %v1248, %v1436
        %v1438 = vpop.f32.mrb[0].mxu0
        %v1439 = vadd.f32 %v1252, %v1438
        %1440 = vmatprep.mubr.f32.mxu0 0.0
        %1441 = vmatmul.mubr.f32.gmra.mrb[0].mxu0 %v1293
        %v1442 = vpop.f32.mrb[0].mxu0
        %v1443 = vadd.f32 %v1248, %v1442
        %v1444 = vpop.f32.mrb[0].mxu0
        %v1445 = vadd.f32 %v1252, %v1444
        %1446 = vmatprep.mubr.f32.mxu0 0.0
        %1447 = vmatmul.mubr.f32.gmra.mrb[0].mxu0 %v1296
        %v1448 = vpop.f32.mrb[0].mxu0
        %v1449 = vadd.f32 %v1248, %v1448
        %v1450 = vpop.f32.mrb[0].mxu0
        %v1451 = vadd.f32 %v1252, %v1450
        %1452 = vmatprep.mubr.f32.mxu0 0.0
        %1453 = vmatmul.mubr.f32.gmra.mrb[0].mxu0 %v1299
        %v1454 = vpop.f32.mrb[0].mxu0
        %v1455 = vadd.f32 %v1248, %v1454
        %v1456 = vpop.f32.mrb[0].mxu0
        %v1457 = vadd.f32 %v1252, %v1456
        %1458 = vmatprep.mubr.f32.mxu0 0.0
        %1459 = vmatmul.mubr.f32.gmra.mrb[0].mxu0 %v1302
        %v1460 = vpop.f32.mrb[0].mxu0
        %v1461 = vadd.f32 %v1248, %v1460
        %v1462 = vpop.f32.mrb[0].mxu0
        %v1463 = vadd.f32 %v1252, %v1462
        %1464 = vdwg.mxu0
        %v1465 = vld [vmem:[%s8] sm:$0x1]
        %v1467 = vlaneseq
        %v1468 = vshrl.u32 %v1467, 7
        %v1469 = vsub.s32 0, %v1468
        %v1470 = vrot.slane %v1465, %v1469
        %1488 = vrot.lane.b32.xlu0 %v1371, 64
        %v1489 = vpop.permute.xlu0 %1488
        %1490 = vrot.lane.b32.xlu0 %v1377, 64
        %v1491 = vpop.permute.xlu0 %1490
        %1492 = vrot.lane.b32.xlu0 %v1383, 64
        %v1493 = vpop.permute.xlu0 %1492
        %1494 = vrot.lane.b32.xlu0 %v1389, 64
        %v1495 = vpop.permute.xlu0 %1494
        %1496 = vrot.lane.b32.xlu0 %v1395, 64
        %v1497 = vpop.permute.xlu0 %1496
        %1498 = vrot.lane.b32.xlu0 %v1401, 64
        %v1499 = vpop.permute.xlu0 %1498
        %1500 = vrot.lane.b32.xlu0 %v1407, 64
        %v1501 = vpop.permute.xlu0 %1500
        %1502 = vrot.lane.b32.xlu0 %v1413, 64
        %v1503 = vpop.permute.xlu0 %1502
        %1504 = vrot.lane.b32.xlu0 %v1419, 64
        %v1505 = vpop.permute.xlu0 %1504
        %1506 = vrot.lane.b32.xlu0 %v1425, 64
        %v1507 = vpop.permute.xlu0 %1506
        %1508 = vrot.lane.b32.xlu0 %v1431, 64
        %v1509 = vpop.permute.xlu0 %1508
        %1510 = vrot.lane.b32.xlu0 %v1437, 64
        %v1511 = vpop.permute.xlu0 %1510
        %1512 = vrot.lane.b32.xlu0 %v1443, 64
        %v1513 = vpop.permute.xlu0 %1512
        %1514 = vrot.lane.b32.xlu0 %v1449, 64
        %v1515 = vpop.permute.xlu0 %1514
        %1516 = vrot.lane.b32.xlu0 %v1455, 64
        %v1517 = vpop.permute.xlu0 %1516
        %1518 = vrot.lane.b32.xlu0 %v1461, 64
        %v1519 = vpop.permute.xlu0 %1518
        %1536 = vmatprep.subr.mxu0 0.0
        %1537 = vmatpush1.msra.mxu0 %v1489
        %1538 = vmatprep.subr.mxu0 0.0
        %1539 = vmatpush1.msra.mxu0 %v1491
        %1540 = vmatprep.subr.mxu0 0.0
        %1541 = vmatpush1.msra.mxu0 %v1493
        %1542 = vmatprep.subr.mxu0 0.0
        %1543 = vmatpush1.msra.mxu0 %v1495
        %1544 = vmatprep.subr.mxu0 0.0
        %1545 = vmatpush1.msra.mxu0 %v1497
        %1546 = vmatprep.subr.mxu0 0.0
        %1547 = vmatpush1.msra.mxu0 %v1499
        %1548 = vmatprep.subr.mxu0 0.0
        %1549 = vmatpush1.msra.mxu0 %v1501
        %1550 = vmatprep.subr.mxu0 0.0
        %1551 = vmatpush1.msra.mxu0 %v1503
        %1552 = vmatprep.subr.mxu0 0.0
        %1553 = vmatpush1.msra.mxu0 %v1505
        %1554 = vmatprep.subr.mxu0 0.0
        %1555 = vmatpush1.msra.mxu0 %v1507
        %1556 = vmatprep.subr.mxu0 0.0
        %1557 = vmatpush1.msra.mxu0 %v1509
        %1558 = vmatprep.subr.mxu0 0.0
        %1559 = vmatpush1.msra.mxu0 %v1511
        %1560 = vmatprep.subr.mxu0 0.0
        %1561 = vmatpush1.msra.mxu0 %v1513
        %1562 = vmatprep.subr.mxu0 0.0
        %1563 = vmatpush1.msra.mxu0 %v1515
        %1564 = vmatprep.subr.mxu0 0.0
        %1565 = vmatpush1.msra.mxu0 %v1517
        %1566 = vmatprep.subr.mxu0 0.0
        %1567 = vmatpush1.msra.mxu0 %v1519
        %1568 = vmatprep.subr.mxu0 0.0
        %1569 = vmatpush1.msra.mxu0 0.0
        %1570 = vmatprep.subr.mxu0 0.0
        %1571 = vmatpush1.msra.mxu0 0.0
        %1572 = vmatprep.subr.mxu0 0.0
        %1573 = vmatpush1.msra.mxu0 0.0
        %1574 = vmatprep.subr.mxu0 0.0
        %1575 = vmatpush1.msra.mxu0 0.0
        %1576 = vmatprep.subr.mxu0 0.0
        %1577 = vmatpush1.msra.mxu0 0.0
        %1578 = vmatprep.subr.mxu0 0.0
        %1579 = vmatpush1.msra.mxu0 0.0
        %1580 = vmatprep.subr.mxu0 0.0
        %1581 = vmatpush1.msra.mxu0 0.0
        %1582 = vmatprep.subr.mxu0 0.0
        %1583 = vmatpush1.msra.mxu0 0.0
        %1584 = vmatprep.subr.mxu0 0.0
        %1585 = vmatpush1.msra.mxu0 0.0
        %1586 = vmatprep.subr.mxu0 0.0
        %1587 = vmatpush1.msra.mxu0 0.0
        %1588 = vmatprep.subr.mxu0 0.0
        %1589 = vmatpush1.msra.mxu0 0.0
        %1590 = vmatprep.subr.mxu0 0.0
        %1591 = vmatpush1.msra.mxu0 0.0
        %1592 = vmatprep.subr.mxu0 0.0
        %1593 = vmatpush1.msra.mxu0 0.0
        %1594 = vmatprep.subr.mxu0 0.0
        %1595 = vmatpush1.msra.mxu0 0.0
        %1596 = vmatprep.subr.mxu0 0.0
        %1597 = vmatpush1.msra.mxu0 0.0
        %1598 = vmatprep.subr.mxu0 0.0
        %1599 = vmatpush1.msra.mxu0 0.0
        %1600 = vmatprep.mubr.f32.mxu0 0.0
        %1601 = vmatmul.mubr.f32.gmra.mrb[0].mxu0 %v627
        %v1602 = vpop.f32.mrb[0].mxu0
        %v1603 = vadd.f32 %v1470, %v1602
        %v1604 = vpop.f32.mrb[0].mxu0
        %1605 = vmatprep.mubr.f32.mxu0 0.0
        %1606 = vmatmul.mubr.f32.gmra.mrb[0].mxu0 %v628
        %v1607 = vpop.f32.mrb[0].mxu0
        %v1608 = vadd.f32 %v1470, %v1607
        %v1609 = vpop.f32.mrb[0].mxu0
        %1610 = vmatprep.mubr.f32.mxu0 0.0
        %1611 = vmatmul.mubr.f32.gmra.mrb[0].mxu0 %v629
        %v1612 = vpop.f32.mrb[0].mxu0
        %v1613 = vadd.f32 %v1470, %v1612
        %v1614 = vpop.f32.mrb[0].mxu0
        %1615 = vmatprep.mubr.f32.mxu0 0.0
        %1616 = vmatmul.mubr.f32.gmra.mrb[0].mxu0 %v630
        %v1617 = vpop.f32.mrb[0].mxu0
        %v1618 = vadd.f32 %v1470, %v1617
        %v1619 = vpop.f32.mrb[0].mxu0
        %1620 = vmatprep.mubr.f32.mxu0 0.0
        %1621 = vmatmul.mubr.f32.gmra.mrb[0].mxu0 %v631
        %v1622 = vpop.f32.mrb[0].mxu0
        %v1623 = vadd.f32 %v1470, %v1622
        %v1624 = vpop.f32.mrb[0].mxu0
        %1625 = vmatprep.mubr.f32.mxu0 0.0
        %1626 = vmatmul.mubr.f32.gmra.mrb[0].mxu0 %v632
        %v1627 = vpop.f32.mrb[0].mxu0
        %v1628 = vadd.f32 %v1470, %v1627
        %v1629 = vpop.f32.mrb[0].mxu0
        %1630 = vmatprep.mubr.f32.mxu0 0.0
        %1631 = vmatmul.mubr.f32.gmra.mrb[0].mxu0 %v633
        %v1632 = vpop.f32.mrb[0].mxu0
        %v1633 = vadd.f32 %v1470, %v1632
        %v1634 = vpop.f32.mrb[0].mxu0
        %1635 = vmatprep.mubr.f32.mxu0 0.0
        %1636 = vmatmul.mubr.f32.gmra.mrb[0].mxu0 %v634
        %v1637 = vpop.f32.mrb[0].mxu0
        %v1638 = vadd.f32 %v1470, %v1637
        %v1639 = vpop.f32.mrb[0].mxu0
        %1640 = vmatprep.mubr.f32.mxu0 0.0
        %1641 = vmatmul.mubr.f32.gmra.mrb[0].mxu0 %v635
        %v1642 = vpop.f32.mrb[0].mxu0
        %v1643 = vadd.f32 %v1470, %v1642
        %v1644 = vpop.f32.mrb[0].mxu0
        %1645 = vmatprep.mubr.f32.mxu0 0.0
        %1646 = vmatmul.mubr.f32.gmra.mrb[0].mxu0 %v636
        %v1647 = vpop.f32.mrb[0].mxu0
        %v1648 = vadd.f32 %v1470, %v1647
        %v1649 = vpop.f32.mrb[0].mxu0
        %1650 = vmatprep.mubr.f32.mxu0 0.0
        %1651 = vmatmul.mubr.f32.gmra.mrb[0].mxu0 %v637
        %v1652 = vpop.f32.mrb[0].mxu0
        %v1653 = vadd.f32 %v1470, %v1652
        %v1654 = vpop.f32.mrb[0].mxu0
        %1655 = vmatprep.mubr.f32.mxu0 0.0
        %1656 = vmatmul.mubr.f32.gmra.mrb[0].mxu0 %v638
        %v1657 = vpop.f32.mrb[0].mxu0
        %v1658 = vadd.f32 %v1470, %v1657
        %v1659 = vpop.f32.mrb[0].mxu0
        %1660 = vmatprep.mubr.f32.mxu0 0.0
        %1661 = vmatmul.mubr.f32.gmra.mrb[0].mxu0 %v639
        %v1662 = vpop.f32.mrb[0].mxu0
        %v1663 = vadd.f32 %v1470, %v1662
        %v1664 = vpop.f32.mrb[0].mxu0
        %1665 = vmatprep.mubr.f32.mxu0 0.0
        %1666 = vmatmul.mubr.f32.gmra.mrb[0].mxu0 %v640
        %v1667 = vpop.f32.mrb[0].mxu0
        %v1668 = vadd.f32 %v1470, %v1667
        %v1669 = vpop.f32.mrb[0].mxu0
        %1670 = vmatprep.mubr.f32.mxu0 0.0
        %1671 = vmatmul.mubr.f32.gmra.mrb[0].mxu0 %v641
        %v1672 = vpop.f32.mrb[0].mxu0
        %v1673 = vadd.f32 %v1470, %v1672
        %v1674 = vpop.f32.mrb[0].mxu0
        %1675 = vmatprep.mubr.f32.mxu0 0.0
        %1676 = vmatmul.mubr.f32.gmra.mrb[0].mxu0 %v642
        %v1677 = vpop.f32.mrb[0].mxu0
        %v1678 = vadd.f32 %v1470, %v1677
        %v1679 = vpop.f32.mrb[0].mxu0
        %1680 = vdwg.mxu0
        %v1681 = vadd.f32 %v1371, %v1603
        %v1682 = vadd.f32 %v1377, %v1608
        %v1683 = vadd.f32 %v1383, %v1613
        %v1684 = vadd.f32 %v1389, %v1618
        %v1685 = vadd.f32 %v1395, %v1623
        %v1686 = vadd.f32 %v1401, %v1628
        %v1687 = vadd.f32 %v1407, %v1633
        %v1688 = vadd.f32 %v1413, %v1638
        %v1689 = vadd.f32 %v1419, %v1643
        %v1690 = vadd.f32 %v1425, %v1648
        %v1691 = vadd.f32 %v1431, %v1653
        %v1692 = vadd.f32 %v1437, %v1658
        %v1693 = vadd.f32 %v1443, %v1663
        %v1694 = vadd.f32 %v1449, %v1668
        %v1695 = vadd.f32 %v1455, %v1673
        %v1696 = vadd.f32 %v1461, %v1678
        %1713 = vrot.lane.b32.xlu0 %v1373, 64
        %v1714 = vpop.permute.xlu0 %1713
        %1715 = vrot.lane.b32.xlu0 %v1379, 64
        %v1716 = vpop.permute.xlu0 %1715
        %1717 = vrot.lane.b32.xlu0 %v1385, 64
        %v1718 = vpop.permute.xlu0 %1717
        %1719 = vrot.lane.b32.xlu0 %v1391, 64
        %v1720 = vpop.permute.xlu0 %1719
        %1721 = vrot.lane.b32.xlu0 %v1397, 64
        %v1722 = vpop.permute.xlu0 %1721
        %1723 = vrot.lane.b32.xlu0 %v1403, 64
        %v1724 = vpop.permute.xlu0 %1723
        %1725 = vrot.lane.b32.xlu0 %v1409, 64
        %v1726 = vpop.permute.xlu0 %1725
        %1727 = vrot.lane.b32.xlu0 %v1415, 64
        %v1728 = vpop.permute.xlu0 %1727
        %1729 = vrot.lane.b32.xlu0 %v1421, 64
        %v1730 = vpop.permute.xlu0 %1729
        %1731 = vrot.lane.b32.xlu0 %v1427, 64
        %v1732 = vpop.permute.xlu0 %1731
        %1733 = vrot.lane.b32.xlu0 %v1433, 64
        %v1734 = vpop.permute.xlu0 %1733
        %1735 = vrot.lane.b32.xlu0 %v1439, 64
        %v1736 = vpop.permute.xlu0 %1735
        %1737 = vrot.lane.b32.xlu0 %v1445, 64
        %v1738 = vpop.permute.xlu0 %1737
        %1739 = vrot.lane.b32.xlu0 %v1451, 64
        %v1740 = vpop.permute.xlu0 %1739
        %1741 = vrot.lane.b32.xlu0 %v1457, 64
        %v1742 = vpop.permute.xlu0 %1741
        %1743 = vrot.lane.b32.xlu0 %v1463, 64
        %v1744 = vpop.permute.xlu0 %1743
        %v1761 = vmul.f32 %v1373, %v1714
        %v1762 = vmul.f32 %v1379, %v1716
        %v1763 = vmul.f32 %v1385, %v1718
        %v1764 = vmul.f32 %v1391, %v1720
        %v1765 = vmul.f32 %v1397, %v1722
        %v1766 = vmul.f32 %v1403, %v1724
        %v1767 = vmul.f32 %v1409, %v1726
        %v1768 = vmul.f32 %v1415, %v1728
        %v1769 = vmul.f32 %v1421, %v1730
        %v1770 = vmul.f32 %v1427, %v1732
        %v1771 = vmul.f32 %v1433, %v1734
        %v1772 = vmul.f32 %v1439, %v1736
        %v1773 = vmul.f32 %v1445, %v1738
        %v1774 = vmul.f32 %v1451, %v1740
        %v1775 = vmul.f32 %v1457, %v1742
        %v1776 = vmul.f32 %v1463, %v1744
        %v1777 = vadd.f32 %v1681, %v1761
        %v1778 = vadd.f32 %v1682, %v1762
        %v1779 = vadd.f32 %v1683, %v1763
        %v1780 = vadd.f32 %v1684, %v1764
        %v1781 = vadd.f32 %v1685, %v1765
        %v1782 = vadd.f32 %v1686, %v1766
        %v1783 = vadd.f32 %v1687, %v1767
        %v1784 = vadd.f32 %v1688, %v1768
        %v1785 = vadd.f32 %v1689, %v1769
        %v1786 = vadd.f32 %v1690, %v1770
        %v1787 = vadd.f32 %v1691, %v1771
        %v1788 = vadd.f32 %v1692, %v1772
        %v1789 = vadd.f32 %v1693, %v1773
        %v1790 = vadd.f32 %v1694, %v1774
        %v1791 = vadd.f32 %v1695, %v1775
        %v1792 = vadd.f32 %v1696, %v1776
        %v1793 = vmax.f32 %v1777, 0.0
        %v1794 = vmax.f32 %v1778, 0.0
        %v1795 = vmax.f32 %v1779, 0.0
        %v1796 = vmax.f32 %v1780, 0.0
        %v1797 = vmax.f32 %v1781, 0.0
        %v1798 = vmax.f32 %v1782, 0.0
        %v1799 = vmax.f32 %v1783, 0.0
        %v1800 = vmax.f32 %v1784, 0.0
        %v1801 = vmax.f32 %v1785, 0.0
        %v1802 = vmax.f32 %v1786, 0.0
        %v1803 = vmax.f32 %v1787, 0.0
        %v1804 = vmax.f32 %v1788, 0.0
        %v1805 = vmax.f32 %v1789, 0.0
        %v1806 = vmax.f32 %v1790, 0.0
        %v1807 = vmax.f32 %v1791, 0.0
        %v1808 = vmax.f32 %v1792, 0.0
        %v1809 = vld [vmem:[%s9] sm:$0xff]
        %v1810 = vld [vmem:[%s9 + $0x8] sm:$0xff]
        %v1811 = vld [vmem:[%s9 + $0x10] sm:$0xff]
        %v1812 = vld [vmem:[%s9 + $0x18] sm:$0xff]
        %v1813 = vld [vmem:[%s9 + $0x20] sm:$0xff]
        %v1814 = vld [vmem:[%s9 + $0x28] sm:$0xff]
        %v1815 = vld [vmem:[%s9 + $0x30] sm:$0xff]
        %v1816 = vld [vmem:[%s9 + $0x38] sm:$0xff]
        %v1817 = vld [vmem:[%s9 + $0x40] sm:$0xff]
        %v1818 = vld [vmem:[%s9 + $0x48] sm:$0xff]
        %v1819 = vld [vmem:[%s9 + $0x50] sm:$0xff]
        %v1820 = vld [vmem:[%s9 + $0x58] sm:$0xff]
        %v1821 = vld [vmem:[%s9 + $0x60] sm:$0xff]
        %v1822 = vld [vmem:[%s9 + $0x68] sm:$0xff]
        %v1823 = vld [vmem:[%s9 + $0x70] sm:$0xff]
        %v1824 = vld [vmem:[%s9 + $0x78] sm:$0xff]
        %v1825 = vld [vmem:[%s10] sm:$0x3]
        %v1827 = vlaneseq
        %v1828 = vshrl.u32 %v1827, 7
        %v1829 = vsub.s32 0, %v1828
        %v1830 = vrot.slane %v1825, %v1829
        %v1831 = vlaneseq
        %v1832 = vshrl.u32 %v1831, 7
        %v1833 = vsub.s32 1, %v1832
        %v1834 = vrot.slane %v1825, %v1833
        %v1838 = vsel %vm1255, %v1793, 0
        %v1841 = vsel %vm1255, %v1794, 0
        %v1844 = vsel %vm1255, %v1795, 0
        %v1847 = vsel %vm1255, %v1796, 0
        %v1850 = vsel %vm1255, %v1797, 0
        %v1853 = vsel %vm1255, %v1798, 0
        %v1856 = vsel %vm1255, %v1799, 0
        %v1859 = vsel %vm1255, %v1800, 0
        %v1862 = vsel %vm1255, %v1801, 0
        %v1865 = vsel %vm1255, %v1802, 0
        %v1868 = vsel %vm1255, %v1803, 0
        %v1871 = vsel %vm1255, %v1804, 0
        %v1874 = vsel %vm1255, %v1805, 0
        %v1877 = vsel %vm1255, %v1806, 0
        %v1880 = vsel %vm1255, %v1807, 0
        %v1883 = vsel %vm1255, %v1808, 0
        %1885 = vmatprep.subr.mxu0 %v1810
        %1886 = vmatpush1.msra.mxu0 %v1809
        %1887 = vmatprep.subr.mxu0 %v1812
        %1888 = vmatpush1.msra.mxu0 %v1811
        %1889 = vmatprep.subr.mxu0 %v1814
        %1890 = vmatpush1.msra.mxu0 %v1813
        %1891 = vmatprep.subr.mxu0 %v1816
        %1892 = vmatpush1.msra.mxu0 %v1815
        %1893 = vmatprep.subr.mxu0 %v1818
        %1894 = vmatpush1.msra.mxu0 %v1817
        %1895 = vmatprep.subr.mxu0 %v1820
        %1896 = vmatpush1.msra.mxu0 %v1819
        %1897 = vmatprep.subr.mxu0 %v1822
        %1898 = vmatpush1.msra.mxu0 %v1821
        %1899 = vmatprep.subr.mxu0 %v1824
        %1900 = vmatpush1.msra.mxu0 %v1823
        %1901 = vmatprep.subr.mxu0 0.0
        %1902 = vmatpush1.msra.mxu0 0.0
        %1903 = vmatprep.subr.mxu0 0.0
        %1904 = vmatpush1.msra.mxu0 0.0
        %1905 = vmatprep.subr.mxu0 0.0
        %1906 = vmatpush1.msra.mxu0 0.0
        %1907 = vmatprep.subr.mxu0 0.0
        %1908 = vmatpush1.msra.mxu0 0.0
        %1909 = vmatprep.subr.mxu0 0.0
        %1910 = vmatpush1.msra.mxu0 0.0
        %1911 = vmatprep.subr.mxu0 0.0
        %1912 = vmatpush1.msra.mxu0 0.0
        %1913 = vmatprep.subr.mxu0 0.0
        %1914 = vmatpush1.msra.mxu0 0.0
        %1915 = vmatprep.subr.mxu0 0.0
        %1916 = vmatpush1.msra.mxu0 0.0
        %1917 = vmatprep.subr.mxu0 0.0
        %1918 = vmatpush1.msra.mxu0 0.0
        %1919 = vmatprep.subr.mxu0 0.0
        %1920 = vmatpush1.msra.mxu0 0.0
        %1921 = vmatprep.subr.mxu0 0.0
        %1922 = vmatpush1.msra.mxu0 0.0
        %1923 = vmatprep.subr.mxu0 0.0
        %1924 = vmatpush1.msra.mxu0 0.0
        %1925 = vmatprep.subr.mxu0 0.0
        %1926 = vmatpush1.msra.mxu0 0.0
        %1927 = vmatprep.subr.mxu0 0.0
        %1928 = vmatpush1.msra.mxu0 0.0
        %1929 = vmatprep.subr.mxu0 0.0
        %1930 = vmatpush1.msra.mxu0 0.0
        %1931 = vmatprep.subr.mxu0 0.0
        %1932 = vmatpush1.msra.mxu0 0.0
        %1933 = vmatprep.subr.mxu0 0.0
        %1934 = vmatpush1.msra.mxu0 0.0
        %1935 = vmatprep.subr.mxu0 0.0
        %1936 = vmatpush1.msra.mxu0 0.0
        %1937 = vmatprep.subr.mxu0 0.0
        %1938 = vmatpush1.msra.mxu0 0.0
        %1939 = vmatprep.subr.mxu0 0.0
        %1940 = vmatpush1.msra.mxu0 0.0
        %1941 = vmatprep.subr.mxu0 0.0
        %1942 = vmatpush1.msra.mxu0 0.0
        %1943 = vmatprep.subr.mxu0 0.0
        %1944 = vmatpush1.msra.mxu0 0.0
        %1945 = vmatprep.subr.mxu0 0.0
        %1946 = vmatpush1.msra.mxu0 0.0
        %1947 = vmatprep.subr.mxu0 0.0
        %1948 = vmatpush1.msra.mxu0 0.0
        %1949 = vmatprep.mubr.f32.mxu0 0.0
        %1950 = vmatmul.mubr.f32.gmra.mrb[0].mxu0 %v1838
        %v1951 = vpop.f32.mrb[0].mxu0
        %v1952 = vadd.f32 %v1830, %v1951
        %v1953 = vpop.f32.mrb[0].mxu0
        %v1954 = vadd.f32 %v1834, %v1953
        %1955 = vmatprep.mubr.f32.mxu0 0.0
        %1956 = vmatmul.mubr.f32.gmra.mrb[0].mxu0 %v1841
        %v1957 = vpop.f32.mrb[0].mxu0
        %v1958 = vadd.f32 %v1830, %v1957
        %v1959 = vpop.f32.mrb[0].mxu0
        %v1960 = vadd.f32 %v1834, %v1959
        %1961 = vmatprep.mubr.f32.mxu0 0.0
        %1962 = vmatmul.mubr.f32.gmra.mrb[0].mxu0 %v1844
        %v1963 = vpop.f32.mrb[0].mxu0
        %v1964 = vadd.f32 %v1830, %v1963
        %v1965 = vpop.f32.mrb[0].mxu0
        %v1966 = vadd.f32 %v1834, %v1965
        %1967 = vmatprep.mubr.f32.mxu0 0.0
        %1968 = vmatmul.mubr.f32.gmra.mrb[0].mxu0 %v1847
        %v1969 = vpop.f32.mrb[0].mxu0
        %v1970 = vadd.f32 %v1830, %v1969
        %v1971 = vpop.f32.mrb[0].mxu0
        %v1972 = vadd.f32 %v1834, %v1971
        %1973 = vmatprep.mubr.f32.mxu0 0.0
        %1974 = vmatmul.mubr.f32.gmra.mrb[0].mxu0 %v1850
        %v1975 = vpop.f32.mrb[0].mxu0
        %v1976 = vadd.f32 %v1830, %v1975
        %v1977 = vpop.f32.mrb[0].mxu0
        %v1978 = vadd.f32 %v1834, %v1977
        %1979 = vmatprep.mubr.f32.mxu0 0.0
        %1980 = vmatmul.mubr.f32.gmra.mrb[0].mxu0 %v1853
        %v1981 = vpop.f32.mrb[0].mxu0
        %v1982 = vadd.f32 %v1830, %v1981
        %v1983 = vpop.f32.mrb[0].mxu0
        %v1984 = vadd.f32 %v1834, %v1983
        %1985 = vmatprep.mubr.f32.mxu0 0.0
        %1986 = vmatmul.mubr.f32.gmra.mrb[0].mxu0 %v1856
        %v1987 = vpop.f32.mrb[0].mxu0
        %v1988 = vadd.f32 %v1830, %v1987
        %v1989 = vpop.f32.mrb[0].mxu0
        %v1990 = vadd.f32 %v1834, %v1989
        %1991 = vmatprep.mubr.f32.mxu0 0.0
        %1992 = vmatmul.mubr.f32.gmra.mrb[0].mxu0 %v1859
        %v1993 = vpop.f32.mrb[0].mxu0
        %v1994 = vadd.f32 %v1830, %v1993
        %v1995 = vpop.f32.mrb[0].mxu0
        %v1996 = vadd.f32 %v1834, %v1995
        %1997 = vmatprep.mubr.f32.mxu0 0.0
        %1998 = vmatmul.mubr.f32.gmra.mrb[0].mxu0 %v1862
        %v1999 = vpop.f32.mrb[0].mxu0
        %v2000 = vadd.f32 %v1830, %v1999
        %v2001 = vpop.f32.mrb[0].mxu0
        %v2002 = vadd.f32 %v1834, %v2001
        %2003 = vmatprep.mubr.f32.mxu0 0.0
        %2004 = vmatmul.mubr.f32.gmra.mrb[0].mxu0 %v1865
        %v2005 = vpop.f32.mrb[0].mxu0
        %v2006 = vadd.f32 %v1830, %v2005
        %v2007 = vpop.f32.mrb[0].mxu0
        %v2008 = vadd.f32 %v1834, %v2007
        %2009 = vmatprep.mubr.f32.mxu0 0.0
        %2010 = vmatmul.mubr.f32.gmra.mrb[0].mxu0 %v1868
        %v2011 = vpop.f32.mrb[0].mxu0
        %v2012 = vadd.f32 %v1830, %v2011
        %v2013 = vpop.f32.mrb[0].mxu0
        %v2014 = vadd.f32 %v1834, %v2013
        %2015 = vmatprep.mubr.f32.mxu0 0.0
        %2016 = vmatmul.mubr.f32.gmra.mrb[0].mxu0 %v1871
        %v2017 = vpop.f32.mrb[0].mxu0
        %v2018 = vadd.f32 %v1830, %v2017
        %v2019 = vpop.f32.mrb[0].mxu0
        %v2020 = vadd.f32 %v1834, %v2019
        %2021 = vmatprep.mubr.f32.mxu0 0.0
        %2022 = vmatmul.mubr.f32.gmra.mrb[0].mxu0 %v1874
        %v2023 = vpop.f32.mrb[0].mxu0
        %v2024 = vadd.f32 %v1830, %v2023
        %v2025 = vpop.f32.mrb[0].mxu0
        %v2026 = vadd.f32 %v1834, %v2025
        %2027 = vmatprep.mubr.f32.mxu0 0.0
        %2028 = vmatmul.mubr.f32.gmra.mrb[0].mxu0 %v1877
        %v2029 = vpop.f32.mrb[0].mxu0
        %v2030 = vadd.f32 %v1830, %v2029
        %v2031 = vpop.f32.mrb[0].mxu0
        %v2032 = vadd.f32 %v1834, %v2031
        %2033 = vmatprep.mubr.f32.mxu0 0.0
        %2034 = vmatmul.mubr.f32.gmra.mrb[0].mxu0 %v1880
        %v2035 = vpop.f32.mrb[0].mxu0
        %v2036 = vadd.f32 %v1830, %v2035
        %v2037 = vpop.f32.mrb[0].mxu0
        %v2038 = vadd.f32 %v1834, %v2037
        %2039 = vmatprep.mubr.f32.mxu0 0.0
        %2040 = vmatmul.mubr.f32.gmra.mrb[0].mxu0 %v1883
        %v2041 = vpop.f32.mrb[0].mxu0
        %v2042 = vadd.f32 %v1830, %v2041
        %v2043 = vpop.f32.mrb[0].mxu0
        %v2044 = vadd.f32 %v1834, %v2043
        %2045 = vdwg.mxu0
        %v2046 = vld [vmem:[%s11] sm:$0x1]
        %v2048 = vlaneseq
        %v2049 = vshrl.u32 %v2048, 7
        %v2050 = vsub.s32 0, %v2049
        %v2051 = vrot.slane %v2046, %v2050
        %2069 = vrot.lane.b32.xlu0 %v1952, 64
        %v2070 = vpop.permute.xlu0 %2069
        %2071 = vrot.lane.b32.xlu0 %v1958, 64
        %v2072 = vpop.permute.xlu0 %2071
        %2073 = vrot.lane.b32.xlu0 %v1964, 64
        %v2074 = vpop.permute.xlu0 %2073
        %2075 = vrot.lane.b32.xlu0 %v1970, 64
        %v2076 = vpop.permute.xlu0 %2075
        %2077 = vrot.lane.b32.xlu0 %v1976, 64
        %v2078 = vpop.permute.xlu0 %2077
        %2079 = vrot.lane.b32.xlu0 %v1982, 64
        %v2080 = vpop.permute.xlu0 %2079
        %2081 = vrot.lane.b32.xlu0 %v1988, 64
        %v2082 = vpop.permute.xlu0 %2081
        %2083 = vrot.lane.b32.xlu0 %v1994, 64
        %v2084 = vpop.permute.xlu0 %2083
        %2085 = vrot.lane.b32.xlu0 %v2000, 64
        %v2086 = vpop.permute.xlu0 %2085
        %2087 = vrot.lane.b32.xlu0 %v2006, 64
        %v2088 = vpop.permute.xlu0 %2087
        %2089 = vrot.lane.b32.xlu0 %v2012, 64
        %v2090 = vpop.permute.xlu0 %2089
        %2091 = vrot.lane.b32.xlu0 %v2018, 64
        %v2092 = vpop.permute.xlu0 %2091
        %2093 = vrot.lane.b32.xlu0 %v2024, 64
        %v2094 = vpop.permute.xlu0 %2093
        %2095 = vrot.lane.b32.xlu0 %v2030, 64
        %v2096 = vpop.permute.xlu0 %2095
        %2097 = vrot.lane.b32.xlu0 %v2036, 64
        %v2098 = vpop.permute.xlu0 %2097
        %2099 = vrot.lane.b32.xlu0 %v2042, 64
        %v2100 = vpop.permute.xlu0 %2099
        %2117 = vmatprep.subr.mxu0 0.0
        %2118 = vmatpush1.msra.mxu0 %v2070
        %2119 = vmatprep.subr.mxu0 0.0
        %2120 = vmatpush1.msra.mxu0 %v2072
        %2121 = vmatprep.subr.mxu0 0.0
        %2122 = vmatpush1.msra.mxu0 %v2074
        %2123 = vmatprep.subr.mxu0 0.0
        %2124 = vmatpush1.msra.mxu0 %v2076
        %2125 = vmatprep.subr.mxu0 0.0
        %2126 = vmatpush1.msra.mxu0 %v2078
        %2127 = vmatprep.subr.mxu0 0.0
        %2128 = vmatpush1.msra.mxu0 %v2080
        %2129 = vmatprep.subr.mxu0 0.0
        %2130 = vmatpush1.msra.mxu0 %v2082
        %2131 = vmatprep.subr.mxu0 0.0
        %2132 = vmatpush1.msra.mxu0 %v2084
        %2133 = vmatprep.subr.mxu0 0.0
        %2134 = vmatpush1.msra.mxu0 %v2086
        %2135 = vmatprep.subr.mxu0 0.0
        %2136 = vmatpush1.msra.mxu0 %v2088
        %2137 = vmatprep.subr.mxu0 0.0
        %2138 = vmatpush1.msra.mxu0 %v2090
        %2139 = vmatprep.subr.mxu0 0.0
        %2140 = vmatpush1.msra.mxu0 %v2092
        %2141 = vmatprep.subr.mxu0 0.0
        %2142 = vmatpush1.msra.mxu0 %v2094
        %2143 = vmatprep.subr.mxu0 0.0
        %2144 = vmatpush1.msra.mxu0 %v2096
        %2145 = vmatprep.subr.mxu0 0.0
        %2146 = vmatpush1.msra.mxu0 %v2098
        %2147 = vmatprep.subr.mxu0 0.0
        %2148 = vmatpush1.msra.mxu0 %v2100
        %2149 = vmatprep.subr.mxu0 0.0
        %2150 = vmatpush1.msra.mxu0 0.0
        %2151 = vmatprep.subr.mxu0 0.0
        %2152 = vmatpush1.msra.mxu0 0.0
        %2153 = vmatprep.subr.mxu0 0.0
        %2154 = vmatpush1.msra.mxu0 0.0
        %2155 = vmatprep.subr.mxu0 0.0
        %2156 = vmatpush1.msra.mxu0 0.0
        %2157 = vmatprep.subr.mxu0 0.0
        %2158 = vmatpush1.msra.mxu0 0.0
        %2159 = vmatprep.subr.mxu0 0.0
        %2160 = vmatpush1.msra.mxu0 0.0
        %2161 = vmatprep.subr.mxu0 0.0
        %2162 = vmatpush1.msra.mxu0 0.0
        %2163 = vmatprep.subr.mxu0 0.0
        %2164 = vmatpush1.msra.mxu0 0.0
        %2165 = vmatprep.subr.mxu0 0.0
        %2166 = vmatpush1.msra.mxu0 0.0
        %2167 = vmatprep.subr.mxu0 0.0
        %2168 = vmatpush1.msra.mxu0 0.0
        %2169 = vmatprep.subr.mxu0 0.0
        %2170 = vmatpush1.msra.mxu0 0.0
        %2171 = vmatprep.subr.mxu0 0.0
        %2172 = vmatpush1.msra.mxu0 0.0
        %2173 = vmatprep.subr.mxu0 0.0
        %2174 = vmatpush1.msra.mxu0 0.0
        %2175 = vmatprep.subr.mxu0 0.0
        %2176 = vmatpush1.msra.mxu0 0.0
        %2177 = vmatprep.subr.mxu0 0.0
        %2178 = vmatpush1.msra.mxu0 0.0
        %2179 = vmatprep.subr.mxu0 0.0
        %2180 = vmatpush1.msra.mxu0 0.0
        %2181 = vmatprep.mubr.f32.mxu0 0.0
        %2182 = vmatmul.mubr.f32.gmra.mrb[0].mxu0 %v627
        %v2183 = vpop.f32.mrb[0].mxu0
        %v2184 = vadd.f32 %v2051, %v2183
        %v2185 = vpop.f32.mrb[0].mxu0
        %2186 = vmatprep.mubr.f32.mxu0 0.0
        %2187 = vmatmul.mubr.f32.gmra.mrb[0].mxu0 %v628
        %v2188 = vpop.f32.mrb[0].mxu0
        %v2189 = vadd.f32 %v2051, %v2188
        %v2190 = vpop.f32.mrb[0].mxu0
        %2191 = vmatprep.mubr.f32.mxu0 0.0
        %2192 = vmatmul.mubr.f32.gmra.mrb[0].mxu0 %v629
        %v2193 = vpop.f32.mrb[0].mxu0
        %v2194 = vadd.f32 %v2051, %v2193
        %v2195 = vpop.f32.mrb[0].mxu0
        %2196 = vmatprep.mubr.f32.mxu0 0.0
        %2197 = vmatmul.mubr.f32.gmra.mrb[0].mxu0 %v630
        %v2198 = vpop.f32.mrb[0].mxu0
        %v2199 = vadd.f32 %v2051, %v2198
        %v2200 = vpop.f32.mrb[0].mxu0
        %2201 = vmatprep.mubr.f32.mxu0 0.0
        %2202 = vmatmul.mubr.f32.gmra.mrb[0].mxu0 %v631
        %v2203 = vpop.f32.mrb[0].mxu0
        %v2204 = vadd.f32 %v2051, %v2203
        %v2205 = vpop.f32.mrb[0].mxu0
        %2206 = vmatprep.mubr.f32.mxu0 0.0
        %2207 = vmatmul.mubr.f32.gmra.mrb[0].mxu0 %v632
        %v2208 = vpop.f32.mrb[0].mxu0
        %v2209 = vadd.f32 %v2051, %v2208
        %v2210 = vpop.f32.mrb[0].mxu0
        %2211 = vmatprep.mubr.f32.mxu0 0.0
        %2212 = vmatmul.mubr.f32.gmra.mrb[0].mxu0 %v633
        %v2213 = vpop.f32.mrb[0].mxu0
        %v2214 = vadd.f32 %v2051, %v2213
        %v2215 = vpop.f32.mrb[0].mxu0
        %2216 = vmatprep.mubr.f32.mxu0 0.0
        %2217 = vmatmul.mubr.f32.gmra.mrb[0].mxu0 %v634
        %v2218 = vpop.f32.mrb[0].mxu0
        %v2219 = vadd.f32 %v2051, %v2218
        %v2220 = vpop.f32.mrb[0].mxu0
        %2221 = vmatprep.mubr.f32.mxu0 0.0
        %2222 = vmatmul.mubr.f32.gmra.mrb[0].mxu0 %v635
        %v2223 = vpop.f32.mrb[0].mxu0
        %v2224 = vadd.f32 %v2051, %v2223
        %v2225 = vpop.f32.mrb[0].mxu0
        %2226 = vmatprep.mubr.f32.mxu0 0.0
        %2227 = vmatmul.mubr.f32.gmra.mrb[0].mxu0 %v636
        %v2228 = vpop.f32.mrb[0].mxu0
        %v2229 = vadd.f32 %v2051, %v2228
        %v2230 = vpop.f32.mrb[0].mxu0
        %2231 = vmatprep.mubr.f32.mxu0 0.0
        %2232 = vmatmul.mubr.f32.gmra.mrb[0].mxu0 %v637
        %v2233 = vpop.f32.mrb[0].mxu0
        %v2234 = vadd.f32 %v2051, %v2233
        %v2235 = vpop.f32.mrb[0].mxu0
        %2236 = vmatprep.mubr.f32.mxu0 0.0
        %2237 = vmatmul.mubr.f32.gmra.mrb[0].mxu0 %v638
        %v2238 = vpop.f32.mrb[0].mxu0
        %v2239 = vadd.f32 %v2051, %v2238
        %v2240 = vpop.f32.mrb[0].mxu0
        %2241 = vmatprep.mubr.f32.mxu0 0.0
        %2242 = vmatmul.mubr.f32.gmra.mrb[0].mxu0 %v639
        %v2243 = vpop.f32.mrb[0].mxu0
        %v2244 = vadd.f32 %v2051, %v2243
        %v2245 = vpop.f32.mrb[0].mxu0
        %2246 = vmatprep.mubr.f32.mxu0 0.0
        %2247 = vmatmul.mubr.f32.gmra.mrb[0].mxu0 %v640
        %v2248 = vpop.f32.mrb[0].mxu0
        %v2249 = vadd.f32 %v2051, %v2248
        %v2250 = vpop.f32.mrb[0].mxu0
        %2251 = vmatprep.mubr.f32.mxu0 0.0
        %2252 = vmatmul.mubr.f32.gmra.mrb[0].mxu0 %v641
        %v2253 = vpop.f32.mrb[0].mxu0
        %v2254 = vadd.f32 %v2051, %v2253
        %v2255 = vpop.f32.mrb[0].mxu0
        %2256 = vmatprep.mubr.f32.mxu0 0.0
        %2257 = vmatmul.mubr.f32.gmra.mrb[0].mxu0 %v642
        %v2258 = vpop.f32.mrb[0].mxu0
        %v2259 = vadd.f32 %v2051, %v2258
        %v2260 = vpop.f32.mrb[0].mxu0
        %2261 = vdwg.mxu0
        %v2262 = vadd.f32 %v1952, %v2184
        %v2263 = vadd.f32 %v1958, %v2189
        %v2264 = vadd.f32 %v1964, %v2194
        %v2265 = vadd.f32 %v1970, %v2199
        %v2266 = vadd.f32 %v1976, %v2204
        %v2267 = vadd.f32 %v1982, %v2209
        %v2268 = vadd.f32 %v1988, %v2214
        %v2269 = vadd.f32 %v1994, %v2219
        %v2270 = vadd.f32 %v2000, %v2224
        %v2271 = vadd.f32 %v2006, %v2229
        %v2272 = vadd.f32 %v2012, %v2234
        %v2273 = vadd.f32 %v2018, %v2239
        %v2274 = vadd.f32 %v2024, %v2244
        %v2275 = vadd.f32 %v2030, %v2249
        %v2276 = vadd.f32 %v2036, %v2254
        %v2277 = vadd.f32 %v2042, %v2259
        %2294 = vrot.lane.b32.xlu0 %v1954, 64
        %v2295 = vpop.permute.xlu0 %2294
        %2296 = vrot.lane.b32.xlu0 %v1960, 64
        %v2297 = vpop.permute.xlu0 %2296
        %2298 = vrot.lane.b32.xlu0 %v1966, 64
        %v2299 = vpop.permute.xlu0 %2298
        %2300 = vrot.lane.b32.xlu0 %v1972, 64
        %v2301 = vpop.permute.xlu0 %2300
        %2302 = vrot.lane.b32.xlu0 %v1978, 64
        %v2303 = vpop.permute.xlu0 %2302
        %2304 = vrot.lane.b32.xlu0 %v1984, 64
        %v2305 = vpop.permute.xlu0 %2304
        %2306 = vrot.lane.b32.xlu0 %v1990, 64
        %v2307 = vpop.permute.xlu0 %2306
        %2308 = vrot.lane.b32.xlu0 %v1996, 64
        %v2309 = vpop.permute.xlu0 %2308
        %2310 = vrot.lane.b32.xlu0 %v2002, 64
        %v2311 = vpop.permute.xlu0 %2310
        %2312 = vrot.lane.b32.xlu0 %v2008, 64
        %v2313 = vpop.permute.xlu0 %2312
        %2314 = vrot.lane.b32.xlu0 %v2014, 64
        %v2315 = vpop.permute.xlu0 %2314
        %2316 = vrot.lane.b32.xlu0 %v2020, 64
        %v2317 = vpop.permute.xlu0 %2316
        %2318 = vrot.lane.b32.xlu0 %v2026, 64
        %v2319 = vpop.permute.xlu0 %2318
        %2320 = vrot.lane.b32.xlu0 %v2032, 64
        %v2321 = vpop.permute.xlu0 %2320
        %2322 = vrot.lane.b32.xlu0 %v2038, 64
        %v2323 = vpop.permute.xlu0 %2322
        %2324 = vrot.lane.b32.xlu0 %v2044, 64
        %v2325 = vpop.permute.xlu0 %2324
        %v2342 = vmul.f32 %v1954, %v2295
        %v2343 = vmul.f32 %v1960, %v2297
        %v2344 = vmul.f32 %v1966, %v2299
        %v2345 = vmul.f32 %v1972, %v2301
        %v2346 = vmul.f32 %v1978, %v2303
        %v2347 = vmul.f32 %v1984, %v2305
        %v2348 = vmul.f32 %v1990, %v2307
        %v2349 = vmul.f32 %v1996, %v2309
        %v2350 = vmul.f32 %v2002, %v2311
        %v2351 = vmul.f32 %v2008, %v2313
        %v2352 = vmul.f32 %v2014, %v2315
        %v2353 = vmul.f32 %v2020, %v2317
        %v2354 = vmul.f32 %v2026, %v2319
        %v2355 = vmul.f32 %v2032, %v2321
        %v2356 = vmul.f32 %v2038, %v2323
        %v2357 = vmul.f32 %v2044, %v2325
        %v2358 = vadd.f32 %v2262, %v2342
        %v2359 = vadd.f32 %v2263, %v2343
        %v2360 = vadd.f32 %v2264, %v2344
        %v2361 = vadd.f32 %v2265, %v2345
        %v2362 = vadd.f32 %v2266, %v2346
        %v2363 = vadd.f32 %v2267, %v2347
        %v2364 = vadd.f32 %v2268, %v2348
        %v2365 = vadd.f32 %v2269, %v2349
        %v2366 = vadd.f32 %v2270, %v2350
        %v2367 = vadd.f32 %v2271, %v2351
        %v2368 = vadd.f32 %v2272, %v2352
        %v2369 = vadd.f32 %v2273, %v2353
        %v2370 = vadd.f32 %v2274, %v2354
        %v2371 = vadd.f32 %v2275, %v2355
        %v2372 = vadd.f32 %v2276, %v2356
        %v2373 = vadd.f32 %v2277, %v2357
        %v2374 = vmax.f32 %v2358, 0.0
        %v2375 = vmax.f32 %v2359, 0.0
        %v2376 = vmax.f32 %v2360, 0.0
        %v2377 = vmax.f32 %v2361, 0.0
        %v2378 = vmax.f32 %v2362, 0.0
        %v2379 = vmax.f32 %v2363, 0.0
        %v2380 = vmax.f32 %v2364, 0.0
        %v2381 = vmax.f32 %v2365, 0.0
        %v2382 = vmax.f32 %v2366, 0.0
        %v2383 = vmax.f32 %v2367, 0.0
        %v2384 = vmax.f32 %v2368, 0.0
        %v2385 = vmax.f32 %v2369, 0.0
        %v2386 = vmax.f32 %v2370, 0.0
        %v2387 = vmax.f32 %v2371, 0.0
        %v2388 = vmax.f32 %v2372, 0.0
        %v2389 = vmax.f32 %v2373, 0.0
        %v2390 = vld [vmem:[%s626] sm:$0x1]
        %2391 = vmatprep.subr.mxu0 0.0
        %2392 = vmatpush1.msra.mxu0 %v2374
        %2393 = vmatprep.subr.mxu0 0.0
        %2394 = vmatpush1.msra.mxu0 %v2375
        %2395 = vmatprep.subr.mxu0 0.0
        %2396 = vmatpush1.msra.mxu0 %v2376
        %2397 = vmatprep.subr.mxu0 0.0
        %2398 = vmatpush1.msra.mxu0 %v2377
        %2399 = vmatprep.subr.mxu0 0.0
        %2400 = vmatpush1.msra.mxu0 %v2378
        %2401 = vmatprep.subr.mxu0 0.0
        %2402 = vmatpush1.msra.mxu0 %v2379
        %2403 = vmatprep.subr.mxu0 0.0
        %2404 = vmatpush1.msra.mxu0 %v2380
        %2405 = vmatprep.subr.mxu0 0.0
        %2406 = vmatpush1.msra.mxu0 %v2381
        %2407 = vmatprep.subr.mxu0 0.0
        %2408 = vmatpush1.msra.mxu0 %v2382
        %2409 = vmatprep.subr.mxu0 0.0
        %2410 = vmatpush1.msra.mxu0 %v2383
        %2411 = vmatprep.subr.mxu0 0.0
        %2412 = vmatpush1.msra.mxu0 %v2384
        %2413 = vmatprep.subr.mxu0 0.0
        %2414 = vmatpush1.msra.mxu0 %v2385
        %2415 = vmatprep.subr.mxu0 0.0
        %2416 = vmatpush1.msra.mxu0 %v2386
        %2417 = vmatprep.subr.mxu0 0.0
        %2418 = vmatpush1.msra.mxu0 %v2387
        %2419 = vmatprep.subr.mxu0 0.0
        %2420 = vmatpush1.msra.mxu0 %v2388
        %2421 = vmatprep.subr.mxu0 0.0
        %2422 = vmatpush1.msra.mxu0 %v2389
        %2423 = vmatprep.subr.mxu0 0.0
        %2424 = vmatpush1.msra.mxu0 0.0
        %2425 = vmatprep.subr.mxu0 0.0
        %2426 = vmatpush1.msra.mxu0 0.0
        %2427 = vmatprep.subr.mxu0 0.0
        %2428 = vmatpush1.msra.mxu0 0.0
        %2429 = vmatprep.subr.mxu0 0.0
        %2430 = vmatpush1.msra.mxu0 0.0
        %2431 = vmatprep.subr.mxu0 0.0
        %2432 = vmatpush1.msra.mxu0 0.0
        %2433 = vmatprep.subr.mxu0 0.0
        %2434 = vmatpush1.msra.mxu0 0.0
        %2435 = vmatprep.subr.mxu0 0.0
        %2436 = vmatpush1.msra.mxu0 0.0
        %2437 = vmatprep.subr.mxu0 0.0
        %2438 = vmatpush1.msra.mxu0 0.0
        %2439 = vmatprep.subr.mxu0 0.0
        %2440 = vmatpush1.msra.mxu0 0.0
        %2441 = vmatprep.subr.mxu0 0.0
        %2442 = vmatpush1.msra.mxu0 0.0
        %2443 = vmatprep.subr.mxu0 0.0
        %2444 = vmatpush1.msra.mxu0 0.0
        %2445 = vmatprep.subr.mxu0 0.0
        %2446 = vmatpush1.msra.mxu0 0.0
        %2447 = vmatprep.subr.mxu0 0.0
        %2448 = vmatpush1.msra.mxu0 0.0
        %2449 = vmatprep.subr.mxu0 0.0
        %2450 = vmatpush1.msra.mxu0 0.0
        %2451 = vmatprep.subr.mxu0 0.0
        %2452 = vmatpush1.msra.mxu0 0.0
        %2453 = vmatprep.subr.mxu0 0.0
        %2454 = vmatpush1.msra.mxu0 0.0
        %2455 = vmatprep.mubr.f32.mxu0 0.0
        %2456 = vmatmul.mubr.f32.gmra.mrb[0].mxu0 %v2390
        %v2457 = vpop.f32.mrb[0].mxu0
        %v2458 = vadd.f32 0.0, %v2457
        %v2459 = vpop.f32.mrb[0].mxu0
        %2460 = vdwg.mxu0
        %v2461 = vld [vmem:[%s12] sm:$0x1]
        %v2462 = vmul.f32 %v2458, %v2461
        %v2463 = vld [vmem:[%s13] sm:$0x1]
        %v2464 = vadd.f32 %v2462, %v2463
        %v2465 = vld [vmem:[%s14] sm:$0xff]
        %v2466 = vld [vmem:[%s14 + $0x8] sm:$0xff]
        %v2467 = vld [vmem:[%s14 + $0x10] sm:$0xff]
        %v2468 = vld [vmem:[%s14 + $0x18] sm:$0xff]
        %v2469 = vld [vmem:[%s14 + $0x20] sm:$0xff]
        %v2470 = vld [vmem:[%s14 + $0x28] sm:$0xff]
        %v2471 = vld [vmem:[%s14 + $0x30] sm:$0xff]
        %v2472 = vld [vmem:[%s14 + $0x38] sm:$0xff]
        %v2473 = vld [vmem:[%s15] sm:$0x1]
        %v2475 = vsel %vm1255, %v2464, 0
        %2477 = vmatprep.subr.mxu0 0.0
        %2478 = vmatpush1.msra.mxu0 %v2465
        %2479 = vmatprep.subr.mxu0 0.0
        %2480 = vmatpush1.msra.mxu0 %v2466
        %2481 = vmatprep.subr.mxu0 0.0
        %2482 = vmatpush1.msra.mxu0 %v2467
        %2483 = vmatprep.subr.mxu0 0.0
        %2484 = vmatpush1.msra.mxu0 %v2468
        %2485 = vmatprep.subr.mxu0 0.0
        %2486 = vmatpush1.msra.mxu0 %v2469
        %2487 = vmatprep.subr.mxu0 0.0
        %2488 = vmatpush1.msra.mxu0 %v2470
        %2489 = vmatprep.subr.mxu0 0.0
        %2490 = vmatpush1.msra.mxu0 %v2471
        %2491 = vmatprep.subr.mxu0 0.0
        %2492 = vmatpush1.msra.mxu0 %v2472
        %2493 = vmatprep.subr.mxu0 0.0
        %2494 = vmatpush1.msra.mxu0 0.0
        %2495 = vmatprep.subr.mxu0 0.0
        %2496 = vmatpush1.msra.mxu0 0.0
        %2497 = vmatprep.subr.mxu0 0.0
        %2498 = vmatpush1.msra.mxu0 0.0
        %2499 = vmatprep.subr.mxu0 0.0
        %2500 = vmatpush1.msra.mxu0 0.0
        %2501 = vmatprep.subr.mxu0 0.0
        %2502 = vmatpush1.msra.mxu0 0.0
        %2503 = vmatprep.subr.mxu0 0.0
        %2504 = vmatpush1.msra.mxu0 0.0
        %2505 = vmatprep.subr.mxu0 0.0
        %2506 = vmatpush1.msra.mxu0 0.0
        %2507 = vmatprep.subr.mxu0 0.0
        %2508 = vmatpush1.msra.mxu0 0.0
        %2509 = vmatprep.subr.mxu0 0.0
        %2510 = vmatpush1.msra.mxu0 0.0
        %2511 = vmatprep.subr.mxu0 0.0
        %2512 = vmatpush1.msra.mxu0 0.0
        %2513 = vmatprep.subr.mxu0 0.0
        %2514 = vmatpush1.msra.mxu0 0.0
        %2515 = vmatprep.subr.mxu0 0.0
        %2516 = vmatpush1.msra.mxu0 0.0
        %2517 = vmatprep.subr.mxu0 0.0
        %2518 = vmatpush1.msra.mxu0 0.0
        %2519 = vmatprep.subr.mxu0 0.0
        %2520 = vmatpush1.msra.mxu0 0.0
        %2521 = vmatprep.subr.mxu0 0.0
        %2522 = vmatpush1.msra.mxu0 0.0
        %2523 = vmatprep.subr.mxu0 0.0
        %2524 = vmatpush1.msra.mxu0 0.0
        %2525 = vmatprep.subr.mxu0 0.0
        %2526 = vmatpush1.msra.mxu0 0.0
        %2527 = vmatprep.subr.mxu0 0.0
        %2528 = vmatpush1.msra.mxu0 0.0
        %2529 = vmatprep.subr.mxu0 0.0
        %2530 = vmatpush1.msra.mxu0 0.0
        %2531 = vmatprep.subr.mxu0 0.0
        %2532 = vmatpush1.msra.mxu0 0.0
        %2533 = vmatprep.subr.mxu0 0.0
        %2534 = vmatpush1.msra.mxu0 0.0
        %2535 = vmatprep.subr.mxu0 0.0
        %2536 = vmatpush1.msra.mxu0 0.0
        %2537 = vmatprep.subr.mxu0 0.0
        %2538 = vmatpush1.msra.mxu0 0.0
        %2539 = vmatprep.subr.mxu0 0.0
        %2540 = vmatpush1.msra.mxu0 0.0
        %2541 = vmatprep.mubr.f32.mxu0 0.0
        %2542 = vmatmul.mubr.f32.gmra.mrb[0].mxu0 %v2475
        %v2543 = vpop.f32.mrb[0].mxu0
        %v2544 = vadd.f32 %v2473, %v2543
        %v2545 = vpop.f32.mrb[0].mxu0
        %2546 = vdwg.mxu0
        %v2547 = vmax.f32 %v2544, 0.0
        %v2548 = vld [vmem:[%s16] sm:$0xff]
        %v2549 = vld [vmem:[%s16 + $0x8] sm:$0xff]
        %v2550 = vld [vmem:[%s16 + $0x10] sm:$0xff]
        %v2551 = vld [vmem:[%s16 + $0x18] sm:$0xff]
        %v2552 = vld [vmem:[%s17] sm:$0x1]
        %vm2553 = vcmask 261120
        %v2555 = vsel %vm2553, %v2547, 0
        %2557 = vmatprep.subr.mxu0 0.0
        %2558 = vmatpush1.msra.mxu0 %v2548
        %2559 = vmatprep.subr.mxu0 0.0
        %2560 = vmatpush1.msra.mxu0 %v2549
        %2561 = vmatprep.subr.mxu0 0.0
        %2562 = vmatpush1.msra.mxu0 %v2550
        %2563 = vmatprep.subr.mxu0 0.0
        %2564 = vmatpush1.msra.mxu0 %v2551
        %2565 = vmatprep.subr.mxu0 0.0
        %2566 = vmatpush1.msra.mxu0 0.0
        %2567 = vmatprep.subr.mxu0 0.0
        %2568 = vmatpush1.msra.mxu0 0.0
        %2569 = vmatprep.subr.mxu0 0.0
        %2570 = vmatpush1.msra.mxu0 0.0
        %2571 = vmatprep.subr.mxu0 0.0
        %2572 = vmatpush1.msra.mxu0 0.0
        %2573 = vmatprep.subr.mxu0 0.0
        %2574 = vmatpush1.msra.mxu0 0.0
        %2575 = vmatprep.subr.mxu0 0.0
        %2576 = vmatpush1.msra.mxu0 0.0
        %2577 = vmatprep.subr.mxu0 0.0
        %2578 = vmatpush1.msra.mxu0 0.0
        %2579 = vmatprep.subr.mxu0 0.0
        %2580 = vmatpush1.msra.mxu0 0.0
        %2581 = vmatprep.subr.mxu0 0.0
        %2582 = vmatpush1.msra.mxu0 0.0
        %2583 = vmatprep.subr.mxu0 0.0
        %2584 = vmatpush1.msra.mxu0 0.0
        %2585 = vmatprep.subr.mxu0 0.0
        %2586 = vmatpush1.msra.mxu0 0.0
        %2587 = vmatprep.subr.mxu0 0.0
        %2588 = vmatpush1.msra.mxu0 0.0
        %2589 = vmatprep.subr.mxu0 0.0
        %2590 = vmatpush1.msra.mxu0 0.0
        %2591 = vmatprep.subr.mxu0 0.0
        %2592 = vmatpush1.msra.mxu0 0.0
        %2593 = vmatprep.subr.mxu0 0.0
        %2594 = vmatpush1.msra.mxu0 0.0
        %2595 = vmatprep.subr.mxu0 0.0
        %2596 = vmatpush1.msra.mxu0 0.0
        %2597 = vmatprep.subr.mxu0 0.0
        %2598 = vmatpush1.msra.mxu0 0.0
        %2599 = vmatprep.subr.mxu0 0.0
        %2600 = vmatpush1.msra.mxu0 0.0
        %2601 = vmatprep.subr.mxu0 0.0
        %2602 = vmatpush1.msra.mxu0 0.0
        %2603 = vmatprep.subr.mxu0 0.0
        %2604 = vmatpush1.msra.mxu0 0.0
        %2605 = vmatprep.subr.mxu0 0.0
        %2606 = vmatpush1.msra.mxu0 0.0
        %2607 = vmatprep.subr.mxu0 0.0
        %2608 = vmatpush1.msra.mxu0 0.0
        %2609 = vmatprep.subr.mxu0 0.0
        %2610 = vmatpush1.msra.mxu0 0.0
        %2611 = vmatprep.subr.mxu0 0.0
        %2612 = vmatpush1.msra.mxu0 0.0
        %2613 = vmatprep.subr.mxu0 0.0
        %2614 = vmatpush1.msra.mxu0 0.0
        %2615 = vmatprep.subr.mxu0 0.0
        %2616 = vmatpush1.msra.mxu0 0.0
        %2617 = vmatprep.subr.mxu0 0.0
        %2618 = vmatpush1.msra.mxu0 0.0
        %2619 = vmatprep.subr.mxu0 0.0
        %2620 = vmatpush1.msra.mxu0 0.0
        %2621 = vmatprep.mubr.f32.mxu0 0.0
        %2622 = vmatmul.mubr.f32.gmra.mrb[0].mxu0 %v2555
        %v2623 = vpop.f32.mrb[0].mxu0
        %v2624 = vadd.f32 %v2552, %v2623
        %v2625 = vpop.f32.mrb[0].mxu0
        %2626 = vdwg.mxu0
        %vm2627 = vcmask 73728
        %v2628 = vsel %vm2627, %v2624, -inf
        %2629 = vmax.xlane.f32.xlu0 %v2628
        %v2630 = vpop.xlane.xlu0 %2629
        %v2631 = vsub.f32 %v2624, %v2630
        %v2632 = vmul.f32 %v2631, 1.442695
        %v2633 = vpow.pop %v2632
        %v2634 = vsel %vm2627, %v2633, 0.0
        %2635 = vadd.xlane.f32.xlu0 %v2634
        %v2636 = vpop.xlane.xlu0 %2635
        %v2637 = vlog2.pop %v2636
        %v2638 = vmul.f32 %v2637, 0.6931472
        %v2639 = vadd.f32 %v2630, %v2638
        %v2640 = vsub.f32 %v2624, %v2639
        %2641 = vst.msk [vmem:[%s618] sm:$0x1] %vm2627, %v2640
        %s2642 = sand.u32 %s436, 1
        %s2643 = scalar_lea.sflag [#allocation4], %s2642
        %s2644 = sand.u32 %s436, 1
        %s2645 = scalar_lea.vmem [#allocation5], %s2644
        // Predicated region
        $region97: #{gnnml1_forward.1} parent=91 // pred_check
          %p2646 = pneg %p446
        $region98: #{gnnml1_forward.1} parent=91 // pred_check_branch
          %2648 = sbr.rel (%p2646) target = $region100
        $region99: #{gnnml1_forward.1} parent=91 // pred_region
          %s2650 = ssub.s32 16, 16
          %2651 = vsyncadd %s2643, %s2650
          %s2652 = smul.addr %s35, 16
          %s2653 = scalar_lea.hbm %s18, %s2652
          %s2655 = sshll.u32 %s2645, 4
          %s2656 = int_to_ptr.vmem [resolvable:$true] %s2655
          %2658 = dma.vmem_to_hbm [thread:$0]  %s2656, 16, %s2653, %s2643
        $region100: #{gnnml1_forward.1} parent=91 // pred_fallthru
          _
      $region92: #{gnnml1_forward.1} parent=5 // pred_fallthru
        _
      %p2659 = scmp.le.s32.totalorder 2, %s30
      // Predicated region
      $region101: #{gnnml1_forward.1} parent=5 // pred_check
        %p2660 = pneg %p2659
      $region102: #{gnnml1_forward.1} parent=5 // pred_check_branch
        %2662 = sbr.rel (%p2660) target = $region104
      $region103: #{gnnml1_forward.1} parent=5 // pred_region
        %s2663 = ssub.s32 %s30, 2
        // Predicated region
        $region105: #{gnnml1_forward.1} parent=103 // pred_check
          %p2664 = pneg %p452
        $region106: #{gnnml1_forward.1} parent=103 // pred_check_branch
          %2666 = sbr.rel (%p2664) target = $region108
        $region107: #{gnnml1_forward.1} parent=103 // pred_region
          %s2667 = sand.u32 %s437, 1
          %s2668 = scalar_lea.sflag [#allocation4], %s2667
          %s2669 = sand.u32 %s437, 1
          %s2670 = scalar_lea.vmem [#allocation5], %s2669
          %2671 = dma.done %s2668, 16
        $region108: #{gnnml1_forward.1} parent=103 // pred_fallthru
          _
      $region104: #{gnnml1_forward.1} parent=5 // pred_fallthru
        _
    $region6: #{gnnml1_forward.1} parent=1 // loop_footer
      %s34 = sadd.s32 1, %s30
    $region7: #{gnnml1_forward.1} parent=1 // loop_footer_branch
      %29 = sbr.rel target = $region3
    $region8: #{gnnml1_forward.1} parent=1 // loop_exit
      _
    %2672 = vsyncpa [#allocation3], 1
    %s2673 = scalar_lea.sflag [#allocation3], 1
    %2674 = vsyncpa %s2673, 1
    %2675 = vsyncpa [#allocation4], 1
    %s2676 = scalar_lea.sflag [#allocation4], 1
    %2677 = vsyncpa %s2676, 1

</llo_original>
